<compile_context>
chip_gen: v7x
topology: tpu7x:2x2x1
jax: 0.10.0
libtpu: 0.0.40
codegen_flags: <defaults>
</compile_context>

<pallas_src>
import functools
import math

import jax
import jax.numpy as jnp
from jax import lax
from jax.experimental import pallas as pl
from jax.experimental.pallas import tpu as pltpu

NEG_SLOPE = 0.01  # ABN default leaky_relu slope
BN_EPS = 1e-5


def _leaky_relu(x):
    return jnp.where(x >= 0, x, NEG_SLOPE * x)


def _round_up(n, m):
    return ((n + m - 1) // m) * m


# ---------------------------------------------------------------------------
# Pre-pass: per-position projections, hoisted out of the key-reduction loop.
#   kq = leaky_relu(x @ wk_eff + bk_eff)   (key == query, scale folded in)
#   v  = x @ wv + bv
#   xf = x @ wfx_eff                        (feats half of the fuse conv)
# ---------------------------------------------------------------------------
def projection_kernel(x_ref, wk_ref, bk_ref, wv_ref, bv_ref, wfx_ref,
                      kq_ref, v_ref, xf_ref):
    x = x_ref[0]                                              # (T, Cin_p) bf16
    kq = jnp.dot(x, wk_ref[...],
                 preferred_element_type=jnp.float32) + bk_ref[...]
    kq_ref[0] = _leaky_relu(kq).astype(jnp.bfloat16)
    v = jnp.dot(x, wv_ref[...],
                preferred_element_type=jnp.float32) + bv_ref[...]
    v_ref[0] = v.astype(jnp.bfloat16)
    xf_ref[0] = jnp.dot(x, wfx_ref[...],
                        preferred_element_type=jnp.float32).astype(jnp.bfloat16)


# ---------------------------------------------------------------------------
# Flash-attention-style fused stage + fuse conv.
# grid = (B, HW_p // tq, HW_p // tk); key-tile axis is the reduction (last).
# ---------------------------------------------------------------------------
def base_oc_flash_kernel(kq_q_ref, kq_k_ref, v_ref, xf_ref, wfc_ref, bf_ref,
                         o_ref, m_sc, l_sc, acc_sc, *, tk, hw_real, mask_keys):
    k_idx = pl.program_id(2)

    @pl.when(k_idx == 0)
    def _init():
        m_sc[...] = jnp.full_like(m_sc, -jnp.inf)
        l_sc[...] = jnp.zeros_like(l_sc)
        acc_sc[...] = jnp.zeros_like(acc_sc)

    # scores: (TQ,Kc) x (TK,Kc) -> (TQ,TK), contracting the key-channel dim
    # (canonical flash NT form, no explicit transpose/relayout).
    s = lax.dot_general(kq_q_ref[0], kq_k_ref[0],
                        dimension_numbers=(((1,), (1,)), ((), ())),
                        preferred_element_type=jnp.float32)

    if mask_keys:  # static: only emitted when HW was padded up to a tile multiple
        k_pos = k_idx * tk + lax.broadcasted_iota(jnp.int32, (1, tk), 1)
        s = jnp.where(k_pos < hw_real, s, -jnp.inf)

    # Online softmax (stats in f32, exp on bf16 operands).
    m_prev = m_sc[...]
    m_new = jnp.maximum(m_prev, jnp.max(s, axis=-1, keepdims=True))
    alpha = jnp.exp(m_prev - m_new)
    p = jnp.exp((s - m_new).astype(jnp.bfloat16))             # bf16 EUP path
    l_sc[...] = alpha * l_sc[...] + jnp.sum(p.astype(jnp.float32),
                                            axis=-1, keepdims=True)
    acc_sc[...] = alpha * acc_sc[...] + jnp.dot(
        p, v_ref[0], preferred_element_type=jnp.float32)
    m_sc[...] = m_new

    @pl.when(k_idx == pl.num_programs(2) - 1)
    def _finalize():
        # ctx = softmax(sim) @ value ; W conv is folded into wfc_ref.
        ctx = acc_sc[...] * pl.reciprocal(l_sc[...], approx=True)
        out = (jnp.dot(ctx.astype(jnp.bfloat16), wfc_ref[...],
                       preferred_element_type=jnp.float32)
               + xf_ref[0].astype(jnp.float32)
               + bf_ref[...])
        o_ref[0] = _leaky_relu(out).astype(o_ref.dtype)


def base_oc_forward(x_nchw, params, *, tq=None, tk=None, out_dtype=jnp.float32):
    """x_nchw: (B, Cin, H, W) float32. Returns (B, Cout, H, W) float32."""
    B, Cin, H, W = x_nchw.shape
    HW = H * W
    Kc = params["wk"].shape[1]
    Vc = params["wv"].shape[1]
    Cout = params["wf"].shape[1]

    # Lane-dense (multiple-of-128) channel dims.
    Cin_p, Kc_p = _round_up(Cin, 128), _round_up(Kc, 128)
    Vc_p, Cout_p = _round_up(Vc, 128), _round_up(Cout, 128)

    # Tiles over HW. Default cap of 512 is v7x-VMEM-safe; on 128 MiB v5e/v6e
    # pass a larger tk explicitly to cut online-softmax rescale passes.
    if tq is None:
        tq = min(512, _round_up(HW, 128))
    if tk is None:
        tk = min(512, _round_up(HW, 128))
    assert tq % 128 == 0 and tk % 128 == 0
    HW_p = _round_up(HW, math.lcm(tq, tk))

    # NCHW -> (B, HW, Cin) in bf16 (cast BEFORE transpose/pad: half the bytes),
    # then pad HW and Cin.
    # TODO(synk): fold this transpose into the projection pre-pass.
    x = jnp.transpose(x_nchw.astype(jnp.bfloat16).reshape(B, Cin, HW), (0, 2, 1))
    x = jnp.pad(x, ((0, 0), (0, HW_p - HW), (0, Cin_p - Cin)))

    # --- fold BN / scale / W-conv into the weights (plain-JAX glue) ---
    sk = params["gamma_k"] / jnp.sqrt(params["var_k"] + BN_EPS)           # (Kc,)
    c = float(Kc) ** -0.25        # sqrt of Kc^-0.5; leaky_relu is +homogeneous
    wk_eff = params["wk"] * sk[None, :] * c                                # (Cin,Kc)
    bk_eff = ((params["bk"] - params["mean_k"]) * sk + params["beta_k"]) * c

    sf = params["gamma_f"] / jnp.sqrt(params["var_f"] + BN_EPS)           # (Cout,)
    wf_eff = params["wf"] * sf[None, :]                                    # (2Cin,Cout)
    wf_ctx = wf_eff[:Cin]                                                  # context half
    wf_x = wf_eff[Cin:]                                                    # feats half
    bf_eff = (params["bf"] - params["mean_f"]) * sf + params["beta_f"]
    # Fold W conv (ctx@ww + bw) into the fuse conv (no nonlinearity between).
    wfc_eff = params["ww"] @ wf_ctx                                        # (Vc,Cout)
    bf_eff = bf_eff + params["bw"] @ wf_ctx                                # (Cout,)

    def pad2(a, r, cc):
        return jnp.pad(a, ((0, r - a.shape[0]), (0, cc - a.shape[1])))

    def pad1(a, n):
        return jnp.pad(a, ((0, n - a.shape[0]),))

    wk_p = pad2(wk_eff, Cin_p, Kc_p).astype(jnp.bfloat16)
    bk_p = pad1(bk_eff, Kc_p).astype(jnp.float32)[None, :]
    wv_p = pad2(params["wv"], Cin_p, Vc_p).astype(jnp.bfloat16)
    bv_p = pad1(params["bv"], Vc_p).astype(jnp.float32)[None, :]
    wfc_p = pad2(wfc_eff, Vc_p, Cout_p).astype(jnp.bfloat16)
    wfx_p = pad2(wf_x, Cin_p, Cout_p).astype(jnp.bfloat16)
    bf_p = pad1(bf_eff, Cout_p).astype(jnp.float32)[None, :]

    # ---------------- projection pre-pass (once per spatial position) -------
    t_pre = tq                              # divides HW_p by construction
    proj_vmem = 2 * (t_pre * Cin_p * 2
                     + Cin_p * (Kc_p + Vc_p + Cout_p) * 2
                     + (Kc_p + Vc_p + Cout_p) * 4
                     + t_pre * (Kc_p + Vc_p + Cout_p) * 2)
    proj_vmem += 4 * t_pre * max(Kc_p, Vc_p, Cout_p) * 4     # f32 temporaries
    proj_vmem = min(max(int(1.5 * proj_vmem) + (4 << 20), 16 << 20), 48 << 20)

    full2 = lambda shape: pl.BlockSpec(shape, lambda b, i: (0,) * len(shape))

    kq, v, xf = pl.pallas_call(
        projection_kernel,
        out_shape=(
            jax.ShapeDtypeStruct((B, HW_p, Kc_p), jnp.bfloat16),
            jax.ShapeDtypeStruct((B, HW_p, Vc_p), jnp.bfloat16),
            jax.ShapeDtypeStruct((B, HW_p, Cout_p), jnp.bfloat16),
        ),
        grid_spec=pltpu.PrefetchScalarGridSpec(
            num_scalar_prefetch=0,
            grid=(B, HW_p // t_pre),
            in_specs=[
                pl.BlockSpec((1, t_pre, Cin_p), lambda b, i: (b, i, 0)),   # x
                full2((Cin_p, Kc_p)), full2((1, Kc_p)),     # wk_eff, bk_eff
                full2((Cin_p, Vc_p)), full2((1, Vc_p)),     # wv, bv
                full2((Cin_p, Cout_p)),                     # wfx_eff
            ],
            out_specs=[
                pl.BlockSpec((1, t_pre, Kc_p), lambda b, i: (b, i, 0)),
                pl.BlockSpec((1, t_pre, Vc_p), lambda b, i: (b, i, 0)),
                pl.BlockSpec((1, t_pre, Cout_p), lambda b, i: (b, i, 0)),
            ],
        ),
        compiler_params=pltpu.CompilerParams(
            dimension_semantics=("parallel", "parallel"),
            vmem_limit_bytes=proj_vmem,
        ),
    )(x, wk_p, bk_p, wv_p, bv_p, wfx_p)

    # ---------------- flash attention + fused output conv -------------------
    flash_vmem = 2 * (tq * Kc_p * 2 + tk * Kc_p * 2 + tk * Vc_p * 2
                      + tq * Cout_p * 2 + Vc_p * Cout_p * 2 + Cout_p * 4
                      + tq * Cout_p * 4)                 # double-buffered in/out
    flash_vmem += tq * Vc_p * 4 + 2 * tq * 4             # scratch
    flash_vmem += 4 * tq * tk * 4                        # s/p + compiler temps
    flash_vmem = min(max(int(1.5 * flash_vmem) + (4 << 20), 16 << 20), 48 << 20)

    full3 = lambda shape: pl.BlockSpec(shape, lambda b, q, k: (0,) * len(shape))

    kernel = functools.partial(base_oc_flash_kernel, tk=tk, hw_real=HW,
                               mask_keys=(HW_p != HW))

    out = pl.pallas_call(
        kernel,
        out_shape=jax.ShapeDtypeStruct((B, HW_p, Cout_p), out_dtype),
        grid_spec=pltpu.PrefetchScalarGridSpec(
            num_scalar_prefetch=0,
            grid=(B, HW_p // tq, HW_p // tk),
            in_specs=[
                pl.BlockSpec((1, tq, Kc_p), lambda b, q, k: (b, q, 0)),    # query proj
                pl.BlockSpec((1, tk, Kc_p), lambda b, q, k: (b, k, 0)),    # key proj
                pl.BlockSpec((1, tk, Vc_p), lambda b, q, k: (b, k, 0)),    # value proj
                pl.BlockSpec((1, tq, Cout_p), lambda b, q, k: (b, q, 0)),  # feats half
                full3((Vc_p, Cout_p)),                                     # wfc (W folded)
                full3((1, Cout_p)),                                        # bf
            ],
            out_specs=pl.BlockSpec((1, tq, Cout_p), lambda b, q, k: (b, q, 0)),
            scratch_shapes=[
                pltpu.VMEM((tq, 1), jnp.float32),        # running max
                pltpu.VMEM((tq, 1), jnp.float32),        # running sum
                pltpu.VMEM((tq, Vc_p), jnp.float32),     # output accumulator
            ],
        ),
        compiler_params=pltpu.CompilerParams(
            dimension_semantics=("parallel", "parallel", "arbitrary"),
            vmem_limit_bytes=flash_vmem,
        ),
    )(kq, kq, v, xf, wfc_p, bf_p)

    out = out[:, :HW, :Cout].astype(jnp.float32)         # drop HW/channel padding
    return jnp.transpose(out, (0, 2, 1)).reshape(B, Cout, H, W)


def base_oc_reference(x_nchw, params):
    """Pure-JAX f32 reference mirroring the PyTorch forward (inference mode)."""
    B, Cin, H, W = x_nchw.shape
    Kc = params["wk"].shape[1]
    x = jnp.transpose(x_nchw.reshape(B, Cin, H * W), (0, 2, 1))  # (B, HW, Cin)

    sk = params["gamma_k"] / jnp.sqrt(params["var_k"] + BN_EPS)
    kq = jnp.einsum("bpc,ck->bpk", x, params["wk"]) + params["bk"]
    kq = (kq - params["mean_k"]) * sk + params["beta_k"]
    kq = jnp.where(kq >= 0, kq, NEG_SLOPE * kq)

    v = jnp.einsum("bpc,cv->bpv", x, params["wv"]) + params["bv"]

    sim = jnp.einsum("bpk,bqk->bpq", kq, kq) * (float(Kc) ** -0.5)
    sim = jax.nn.softmax(sim, axis=-1)
    ctx = jnp.einsum("bpq,bqv->bpv", sim, v)
    ctx = jnp.einsum("bpv,vo->bpo", ctx, params["ww"]) + params["bw"]

    cat = jnp.concatenate([ctx, x], axis=-1)                     # (B, HW, 2Cin)
    out = jnp.einsum("bpc,co->bpo", cat, params["wf"]) + params["bf"]
    sf = params["gamma_f"] / jnp.sqrt(params["var_f"] + BN_EPS)
    out = (out - params["mean_f"]) * sf + params["beta_f"]
    out = jnp.where(out >= 0, out, NEG_SLOPE * out)
    return jnp.transpose(out, (0, 2, 1)).reshape(B, -1, H, W)


def make_params(key, in_channels, out_channels, key_channels, value_channels):
    ks = jax.random.split(key, 12)
    return {
        # f_key / f_query: conv(Cin->Kc) + ABN
        "wk": jax.random.normal(ks[0], (in_channels, key_channels), jnp.float32) * 0.2,
        "bk": jax.random.normal(ks[1], (key_channels,), jnp.float32) * 0.1,
        "gamma_k": 1.0 + 0.1 * jax.random.normal(ks[2], (key_channels,), jnp.float32),
        "beta_k": 0.1 * jax.random.normal(ks[3], (key_channels,), jnp.float32),
        "mean_k": 0.05 * jax.random.normal(ks[4], (key_channels,), jnp.float32),
        "var_k": 0.5 + jax.random.uniform(ks[5], (key_channels,), jnp.float32),
        # f_value: conv(Cin->Vc)
        "wv": jax.random.normal(ks[6], (in_channels, value_channels), jnp.float32) * 0.2,
        "bv": jax.random.normal(ks[7], (value_channels,), jnp.float32) * 0.1,
        # W: conv(Vc->Cin), bias initialized to 0 (as in module)
        "ww": jax.random.normal(ks[8], (value_channels, in_channels), jnp.float32) * 0.2,
        "bw": jnp.zeros((in_channels,), jnp.float32),
        # conv_bn_dropout: conv(2*Cin->Cout) + ABN
        "wf": jax.random.normal(ks[9], (2 * in_channels, out_channels), jnp.float32) * 0.2,
        "bf": jax.random.normal(ks[10], (out_channels,), jnp.float32) * 0.1,
        "gamma_f": 1.0 + 0.1 * jax.random.normal(ks[11], (out_channels,), jnp.float32),
        "beta_f": jnp.zeros((out_channels,), jnp.float32),
        "mean_f": jnp.zeros((out_channels,), jnp.float32),
        "var_f": jnp.ones((out_channels,), jnp.float32),
    }


if __name__ == "__main__":
    # HW = 18*18 = 324 is NOT a multiple of the 128 tile, so this exercises the
    # HW-padding + key-masking path; tq=tk=128 -> 3 key tiles, multi-tile
    # online softmax.
    B, Cin, H, W = 2, 16, 18, 18
    Cout, Kc, Vc = 16, 8, 8  # BaseOC requires stage out_channels == Cin (concat)

    key = jax.random.PRNGKey(0)
    k_x, k_p = jax.random.split(key)
    x = jax.random.normal(k_x, (B, Cin, H, W), jnp.float32)
    params = make_params(k_p, Cin, Cout, Kc, Vc)

    out = jax.block_until_ready(base_oc_forward(x, params, tq=128, tk=128))
    ref = jax.block_until_ready(base_oc_reference(x, params))

    assert out.shape == (B, Cout, H, W), out.shape
    # bf16 MXU operands / bf16 exp / bf16 intermediate storage (f32 accumulation
    # throughout) => relaxed tolerance vs the f32 reference.
    assert jnp.allclose(out, ref, rtol=2.5e-2, atol=2.5e-2), \
        float(jnp.max(jnp.abs(out - ref)))
    print("KERNEL_OK")
</pallas_src>

<mosaic_0001>
module attributes {stable_mosaic.version = 11 : i64} {
  func.func @projection_kernel(%arg0: i32, %arg1: i32, %arg2: memref<1x128x128xbf16, #tpu.memory_space<vmem>>, %arg3: memref<128x128xbf16, #tpu.memory_space<vmem>>, %arg4: memref<1x128xf32, #tpu.memory_space<vmem>>, %arg5: memref<128x128xbf16, #tpu.memory_space<vmem>>, %arg6: memref<1x128xf32, #tpu.memory_space<vmem>>, %arg7: memref<128x128xbf16, #tpu.memory_space<vmem>>, %arg8: memref<1x128x128xbf16, #tpu.memory_space<vmem>>, %arg9: memref<1x128x128xbf16, #tpu.memory_space<vmem>>, %arg10: memref<1x128x128xbf16, #tpu.memory_space<vmem>>) attributes {dimension_semantics = [#tpu.dimension_semantics<parallel>, #tpu.dimension_semantics<parallel>], iteration_bounds = array<i64: 2, 3>, scalar_prefetch = 0 : i64, scratch_operands = 0 : i64, tpu.core_type = #tpu.core_type<tc>, window_params = [{transform_indices = @transform_0, window_bounds = array<i64: 1, 128, 128>}, {pipeline_mode = #tpu.pipeline_mode<synchronous>, transform_indices = @transform_1, window_bounds = array<i64: 128, 128>}, {pipeline_mode = #tpu.pipeline_mode<synchronous>, transform_indices = @transform_2, window_bounds = array<i64: 1, 128>}, {pipeline_mode = #tpu.pipeline_mode<synchronous>, transform_indices = @transform_3, window_bounds = array<i64: 128, 128>}, {pipeline_mode = #tpu.pipeline_mode<synchronous>, transform_indices = @transform_4, window_bounds = array<i64: 1, 128>}, {pipeline_mode = #tpu.pipeline_mode<synchronous>, transform_indices = @transform_5, window_bounds = array<i64: 128, 128>}, {transform_indices = @transform_6, window_bounds = array<i64: 1, 128, 128>}, {transform_indices = @transform_7, window_bounds = array<i64: 1, 128, 128>}, {transform_indices = @transform_8, window_bounds = array<i64: 1, 128, 128>}]} {
    %c0 = arith.constant 0 : index
    %c0_0 = arith.constant 0 : index
    %c0_1 = arith.constant 0 : index
    %0 = vector.load %arg2[%c0, %c0_0, %c0_1] : memref<1x128x128xbf16, #tpu.memory_space<vmem>>, vector<1x128x128xbf16>
    %1 = vector.shape_cast %0 : vector<1x128x128xbf16> to vector<128x128xbf16>
    %c0_2 = arith.constant 0 : index
    %c0_3 = arith.constant 0 : index
    %2 = vector.load %arg3[%c0_2, %c0_3] : memref<128x128xbf16, #tpu.memory_space<vmem>>, vector<128x128xbf16>
    %cst = arith.constant dense<0.000000e+00> : vector<128x128xf32>
    %3 = tpu.matmul %1, %2, %cst {dimension_numbers = #tpu.dot_dimension_numbers<[1], [0], [0], [1], [0, 0, 1, 1], [], []>} : vector<128x128xbf16>, vector<128x128xbf16>, vector<128x128xf32> -> vector<128x128xf32>
    %c0_4 = arith.constant 0 : index
    %c0_5 = arith.constant 0 : index
    %4 = vector.load %arg4[%c0_4, %c0_5] : memref<1x128xf32, #tpu.memory_space<vmem>>, vector<1x128xf32>
    %5 = vector.broadcast %4 : vector<1x128xf32> to vector<128x128xf32>
    %6 = arith.addf %3, %5 : vector<128x128xf32>
    %cst_6 = arith.constant 0.000000e+00 : f32
    %7 = vector.broadcast %cst_6 : f32 to vector<128x128xf32>
    %8 = arith.cmpf oge, %6, %7 : vector<128x128xf32>
    %cst_7 = arith.constant 0.00999999977 : f32
    %9 = vector.broadcast %cst_7 : f32 to vector<128x128xf32>
    %10 = arith.mulf %9, %6 : vector<128x128xf32>
    %11 = arith.select %8, %6, %10 : vector<128x128xi1>, vector<128x128xf32>
    %12 = arith.truncf %11 : vector<128x128xf32> to vector<128x128xbf16>
    %c0_8 = arith.constant 0 : index
    %c0_9 = arith.constant 0 : index
    %c0_10 = arith.constant 0 : index
    %13 = vector.load %arg8[%c0_8, %c0_9, %c0_10] : memref<1x128x128xbf16, #tpu.memory_space<vmem>>, vector<1x128x128xbf16>
    %14 = vector.shape_cast %13 : vector<1x128x128xbf16> to vector<128x128xbf16>
    %15 = vector.shape_cast %12 : vector<128x128xbf16> to vector<1x128x128xbf16>
    tpu.vector_store %arg8[%c0_8, %c0_9, %c0_10], %15 {strides = array<i32>} : memref<1x128x128xbf16, #tpu.memory_space<vmem>>, vector<1x128x128xbf16>,
    %c0_11 = arith.constant 0 : index
    %c0_12 = arith.constant 0 : index
    %16 = vector.load %arg5[%c0_11, %c0_12] : memref<128x128xbf16, #tpu.memory_space<vmem>>, vector<128x128xbf16>
    %cst_13 = arith.constant dense<0.000000e+00> : vector<128x128xf32>
    %17 = tpu.matmul %1, %16, %cst_13 {dimension_numbers = #tpu.dot_dimension_numbers<[1], [0], [0], [1], [0, 0, 1, 1], [], []>} : vector<128x128xbf16>, vector<128x128xbf16>, vector<128x128xf32> -> vector<128x128xf32>
    %c0_14 = arith.constant 0 : index
    %c0_15 = arith.constant 0 : index
    %18 = vector.load %arg6[%c0_14, %c0_15] : memref<1x128xf32, #tpu.memory_space<vmem>>, vector<1x128xf32>
    %19 = vector.broadcast %18 : vector<1x128xf32> to vector<128x128xf32>
    %20 = arith.addf %17, %19 : vector<128x128xf32>
    %21 = arith.truncf %20 : vector<128x128xf32> to vector<128x128xbf16>
    %c0_16 = arith.constant 0 : index
    %c0_17 = arith.constant 0 : index
    %c0_18 = arith.constant 0 : index
    %22 = vector.load %arg9[%c0_16, %c0_17, %c0_18] : memref<1x128x128xbf16, #tpu.memory_space<vmem>>, vector<1x128x128xbf16>
    %23 = vector.shape_cast %22 : vector<1x128x128xbf16> to vector<128x128xbf16>
    %24 = vector.shape_cast %21 : vector<128x128xbf16> to vector<1x128x128xbf16>
    tpu.vector_store %arg9[%c0_16, %c0_17, %c0_18], %24 {strides = array<i32>} : memref<1x128x128xbf16, #tpu.memory_space<vmem>>, vector<1x128x128xbf16>,
    %c0_19 = arith.constant 0 : index
    %c0_20 = arith.constant 0 : index
    %25 = vector.load %arg7[%c0_19, %c0_20] : memref<128x128xbf16, #tpu.memory_space<vmem>>, vector<128x128xbf16>
    %cst_21 = arith.constant dense<0.000000e+00> : vector<128x128xf32>
    %26 = tpu.matmul %1, %25, %cst_21 {dimension_numbers = #tpu.dot_dimension_numbers<[1], [0], [0], [1], [0, 0, 1, 1], [], []>} : vector<128x128xbf16>, vector<128x128xbf16>, vector<128x128xf32> -> vector<128x128xf32>
    %27 = arith.truncf %26 : vector<128x128xf32> to vector<128x128xbf16>
    %c0_22 = arith.constant 0 : index
    %c0_23 = arith.constant 0 : index
    %c0_24 = arith.constant 0 : index
    %28 = vector.load %arg10[%c0_22, %c0_23, %c0_24] : memref<1x128x128xbf16, #tpu.memory_space<vmem>>, vector<1x128x128xbf16>
    %29 = vector.shape_cast %28 : vector<1x128x128xbf16> to vector<128x128xbf16>
    %30 = vector.shape_cast %27 : vector<128x128xbf16> to vector<1x128x128xbf16>
    tpu.vector_store %arg10[%c0_22, %c0_23, %c0_24], %30 {strides = array<i32>} : memref<1x128x128xbf16, #tpu.memory_space<vmem>>, vector<1x128x128xbf16>,
    return
  }
  func.func @transform_0(%arg0: i32, %arg1: i32) -> (i32, i32, i32) {
    %c0_i32 = arith.constant 0 : i32
    %c0_i32_0 = arith.constant 0 : i32
    return %arg0, %arg1, %c0_i32 : i32, i32, i32
  }
  func.func @transform_1(%arg0: i32, %arg1: i32) -> (i32, i32) {
    %c0_i32 = arith.constant 0 : i32
    %c0_i32_0 = arith.constant 0 : i32
    %c0_i32_1 = arith.constant 0 : i32
    return %c0_i32, %c0_i32_0 : i32, i32
  }
  func.func @transform_2(%arg0: i32, %arg1: i32) -> (i32, i32) {
    %c0_i32 = arith.constant 0 : i32
    %c0_i32_0 = arith.constant 0 : i32
    %c0_i32_1 = arith.constant 0 : i32
    return %c0_i32, %c0_i32_0 : i32, i32
  }
  func.func @transform_3(%arg0: i32, %arg1: i32) -> (i32, i32) {
    %c0_i32 = arith.constant 0 : i32
    %c0_i32_0 = arith.constant 0 : i32
    %c0_i32_1 = arith.constant 0 : i32
    return %c0_i32, %c0_i32_0 : i32, i32
  }
  func.func @transform_4(%arg0: i32, %arg1: i32) -> (i32, i32) {
    %c0_i32 = arith.constant 0 : i32
    %c0_i32_0 = arith.constant 0 : i32
    %c0_i32_1 = arith.constant 0 : i32
    return %c0_i32, %c0_i32_0 : i32, i32
  }
  func.func @transform_5(%arg0: i32, %arg1: i32) -> (i32, i32) {
    %c0_i32 = arith.constant 0 : i32
    %c0_i32_0 = arith.constant 0 : i32
    %c0_i32_1 = arith.constant 0 : i32
    return %c0_i32, %c0_i32_0 : i32, i32
  }
  func.func @transform_6(%arg0: i32, %arg1: i32) -> (i32, i32, i32) {
    %c0_i32 = arith.constant 0 : i32
    %c0_i32_0 = arith.constant 0 : i32
    return %arg0, %arg1, %c0_i32 : i32, i32, i32
  }
  func.func @transform_7(%arg0: i32, %arg1: i32) -> (i32, i32, i32) {
    %c0_i32 = arith.constant 0 : i32
    %c0_i32_0 = arith.constant 0 : i32
    return %arg0, %arg1, %c0_i32 : i32, i32, i32
  }
  func.func @transform_8(%arg0: i32, %arg1: i32) -> (i32, i32, i32) {
    %c0_i32 = arith.constant 0 : i32
    %c0_i32_0 = arith.constant 0 : i32
    return %arg0, %arg1, %c0_i32 : i32, i32, i32
  }
}

</mosaic_0001>

<llo_original>
// kernel: tpu_custom_call.1
$region0: #{tpu_custom_call.1}
  #allocation0 [shape = 'u32[]', space=smem, size = 0x4, offset = 0x4, fixed_abs, tag = 'smem constant byte address 0x4 - core index']
  #allocation1 [shape = 'u32[144,128]{1,0:T(1,128)}', space=vmem, size = 0x12000, scoped, tag = 'internal scratch']
  %s0 = inlined_call_operand.hbm [shape: bf16[2,384,128], index: 0, kind: input, shape index: {}]
  %s1 = inlined_call_operand.hbm [shape: bf16[128,128], index: 1, kind: input, shape index: {}]
  %s2 = inlined_call_operand.vmem [shape: f32[1,128], index: 2, kind: input, shape index: {}]
  %s3 = inlined_call_operand.hbm [shape: bf16[128,128], index: 3, kind: input, shape index: {}]
  %s4 = inlined_call_operand.vmem [shape: f32[1,128], index: 4, kind: input, shape index: {}]
  %s5 = inlined_call_operand.hbm [shape: bf16[128,128], index: 5, kind: input, shape index: {}]
  %s6 = inlined_call_operand.hbm [shape: bf16[2,384,128], index: 6, kind: output, shape index: {0}]
  %s7 = inlined_call_operand.hbm [shape: bf16[2,384,128], index: 7, kind: output, shape index: {1}]
  %s8 = inlined_call_operand.hbm [shape: bf16[2,384,128], index: 8, kind: output, shape index: {2}]
  %9 = xla_tuple %s6, %s7, %s8
  %s10 = sld [smem:[#allocation0]]
  $region89: #{tpu_custom_call.1} parent=0
    _
  %s12 = ssub.s32 1, %s10
  %s13 = scalar_select 0, %s12, %s10
  $region1: #{tpu_custom_call.1} parent=0
    #allocation2 [shape = 'u8[65536]{0}', space=vmem, size = 0x10000, scoped, tag = 'input window, operand 0']
    #allocation3 [shape = 's32[2]{0}', space=sflag, size = 0x8, scoped, tag = 'scoped memory for tpu_custom_call.1']
    #allocation4 [shape = 's32[2]{0}', space=sflag, size = 0x8, scoped, tag = 'scoped memory for tpu_custom_call.1']
    #allocation5 [shape = 'u8[32768]{0}', space=vmem, size = 0x8000, scoped, tag = 'input window, operand 1, single buffered']
    #allocation6 [shape = 's32[1]{0}', space=sflag, size = 0x4, scoped, tag = 'scoped memory for tpu_custom_call.1']
    #allocation7 [shape = 'u8[32768]{0}', space=vmem, size = 0x8000, scoped, tag = 'input window, operand 3, single buffered']
    #allocation8 [shape = 'u8[32768]{0}', space=vmem, size = 0x8000, scoped, tag = 'input window, operand 5, single buffered']
    #allocation9 [shape = 's32[1]{0}', space=sflag, size = 0x4, scoped, tag = 'scoped memory for tpu_custom_call.1']
    #allocation10 [shape = 'u8[65536]{0}', space=vmem, size = 0x10000, scoped, tag = 'output window, operand 0']
    #allocation11 [shape = 'u8[65536]{0}', space=vmem, size = 0x10000, scoped, tag = 'output window, operand 1']
    #allocation12 [shape = 's32[2]{0}', space=sflag, size = 0x8, scoped, tag = 'scoped memory for tpu_custom_call.1']
    #allocation13 [shape = 'u8[65536]{0}', space=vmem, size = 0x10000, scoped, tag = 'output window, operand 2']
    %14 = vsyncpa [#allocation3], 0
    %s15 = scalar_lea.sflag [#allocation3], 1
    %16 = vsyncpa %s15, 0
    %17 = vsyncpa [#allocation6], 0
    %18 = vsyncpa [#allocation9], 0
    %19 = vsyncpa [#allocation4], 0
    %s20 = scalar_lea.sflag [#allocation4], 1
    %21 = vsyncpa %s20, 0
    %22 = vsyncpa [#allocation12], 0
    %s23 = scalar_lea.sflag [#allocation12], 1
    %24 = vsyncpa %s23, 0
    loop: start=0, step=1, limit=8
    $region2: #{tpu_custom_call.1} parent=1 // loop_pre_header
      _
    $region3: #{tpu_custom_call.1} parent=1 // loop_header
      %s26 = sphi 0, %s30
      %p27 = scmp.ge.s32.totalorder %s26, 8
      %s33 = sphi 0, %s45
      %s34 = sphi 0, %s41
      %s35 = sphi 0, %s33
      %s36 = sphi 0, %s34
      %s37 = sphi 0, %s35
      %s38 = sphi 0, %s36
      %s50 = sphi 0, %s52
      %s53 = sphi 0, %s50
      %s54 = sphi 0, %s53
      %s70 = sphi 0, %s54
      %s74 = sphi 0, %s74
      %s76 = sphi 0, %s74
      %s77 = sphi 0, %s76
      %s91 = sphi 0, %s77
      %s95 = sphi 0, %s95
      %s97 = sphi 0, %s95
      %s98 = sphi 0, %s97
      %s112 = sphi 0, %s98
      %s116 = sphi 0, %s116
      %s118 = sphi 0, %s116
      %s119 = sphi 0, %s118
      %s133 = sphi 0, %s119
      %s137 = sphi 0, %s137
      %s139 = sphi 0, %s137
      %s140 = sphi 0, %s139
      %s154 = sphi 0, %s140
      %s158 = sphi 0, %s158
      %s160 = sphi 0, %s158
      %s161 = sphi 0, %s160
      %s175 = sphi 0, %s161
      %s183 = sphi 0, %s185
      %s186 = sphi 0, %s183
      %s187 = sphi 0, %s186
      %s203 = sphi 0, %s187
      %s211 = sphi 0, %s213
      %s214 = sphi 0, %s211
      %s215 = sphi 0, %s214
      %s231 = sphi 0, %s215
      %s239 = sphi 0, %s241
      %s242 = sphi 0, %s239
      %s243 = sphi 0, %s242
      %s259 = sphi 0, %s243
    $region4: #{tpu_custom_call.1} parent=1 // loop_header_branch
      %29 = sbr.rel (%p27) target = $region8
    $region5: #{tpu_custom_call.1} parent=1 // loop_body
      %s31 = ssub.s32 %s26, 1
      %s32 = ssub.s32 %s26, 2
      %s39 = sadd.s32 1, %s34
      %p40 = scmp.ge.s32.totalorder %s39, 3
      %s41 = scalar_select %p40, 0, %s39
      %s42 = sadd.s32 1, %s33
      %s43 = scalar_select %p40, %s42, %s33
      %p44 = scmp.ge.s32.totalorder %s43, 2
      %s45 = scalar_select %p44, 0, %s43
      %s46 = ssub.s32 %s33, %s45
      %s47 = ssub.s32 %s34, %s41
      %s48 = sor.u32 %s46, %s47
      %p49 = scmp.eq.s32.totalorder %s48, 0
      %s51 = sadd.s32 %s50, 1
      %s52 = scalar_select %p49, %s50, %s51
      %p55 = pneg %p49
      %p56 = scmp.eq.s32.totalorder %s26, 5
      %p57 = por %p55, %p56
      %p58 = scmp.ne.s32.totalorder %s50, %s53
      %p59 = scmp.eq.s32.totalorder %s26, 0
      %p60 = por %p58, %p59
      %p61 = scmp.ne.s32.totalorder %s50, %s53
      %p62 = scmp.eq.s32.totalorder %s31, 5
      %p63 = por %p61, %p62
      %p64 = scmp.ne.s32.totalorder %s53, %s54
      %p65 = scmp.eq.s32.totalorder %s31, 0
      %p66 = por %p64, %p65
      %p67 = scmp.ne.s32.totalorder %s53, %s54
      %p68 = scmp.eq.s32.totalorder %s32, 5
      %p69 = por %p67, %p68
      %p71 = scmp.ne.s32.totalorder %s54, %s70
      %p72 = scmp.eq.s32.totalorder %s32, 0
      %p73 = por %p71, %p72
      %s75 = sadd.s32 %s74, 1
      %p78 = scmp.eq.s32.totalorder %s26, 5
      %p79 = scmp.ne.s32.totalorder %s74, %s76
      %p80 = scmp.eq.s32.totalorder %s26, 0
      %p81 = por %p79, %p80
      %p82 = scmp.ne.s32.totalorder %s74, %s76
      %p83 = scmp.eq.s32.totalorder %s31, 5
      %p84 = por %p82, %p83
      %p85 = scmp.ne.s32.totalorder %s76, %s77
      %p86 = scmp.eq.s32.totalorder %s31, 0
      %p87 = por %p85, %p86
      %p88 = scmp.ne.s32.totalorder %s76, %s77
      %p89 = scmp.eq.s32.totalorder %s32, 5
      %p90 = por %p88, %p89
      %p92 = scmp.ne.s32.totalorder %s77, %s91
      %p93 = scmp.eq.s32.totalorder %s32, 0
      %p94 = por %p92, %p93
      %s96 = sadd.s32 %s95, 1
      %p99 = scmp.eq.s32.totalorder %s26, 5
      %p100 = scmp.ne.s32.totalorder %s95, %s97
      %p101 = scmp.eq.s32.totalorder %s26, 0
      %p102 = por %p100, %p101
      %p103 = scmp.ne.s32.totalorder %s95, %s97
      %p104 = scmp.eq.s32.totalorder %s31, 5
      %p105 = por %p103, %p104
      %p106 = scmp.ne.s32.totalorder %s97, %s98
      %p107 = scmp.eq.s32.totalorder %s31, 0
      %p108 = por %p106, %p107
      %p109 = scmp.ne.s32.totalorder %s97, %s98
      %p110 = scmp.eq.s32.totalorder %s32, 5
      %p111 = por %p109, %p110
      %p113 = scmp.ne.s32.totalorder %s98, %s112
      %p114 = scmp.eq.s32.totalorder %s32, 0
      %p115 = por %p113, %p114
      %s117 = sadd.s32 %s116, 1
      %p120 = scmp.eq.s32.totalorder %s26, 5
      %p121 = scmp.ne.s32.totalorder %s116, %s118
      %p122 = scmp.eq.s32.totalorder %s26, 0
      %p123 = por %p121, %p122
      %p124 = scmp.ne.s32.totalorder %s116, %s118
      %p125 = scmp.eq.s32.totalorder %s31, 5
      %p126 = por %p124, %p125
      %p127 = scmp.ne.s32.totalorder %s118, %s119
      %p128 = scmp.eq.s32.totalorder %s31, 0
      %p129 = por %p127, %p128
      %p130 = scmp.ne.s32.totalorder %s118, %s119
      %p131 = scmp.eq.s32.totalorder %s32, 5
      %p132 = por %p130, %p131
      %p134 = scmp.ne.s32.totalorder %s119, %s133
      %p135 = scmp.eq.s32.totalorder %s32, 0
      %p136 = por %p134, %p135
      %s138 = sadd.s32 %s137, 1
      %p141 = scmp.eq.s32.totalorder %s26, 5
      %p142 = scmp.ne.s32.totalorder %s137, %s139
      %p143 = scmp.eq.s32.totalorder %s26, 0
      %p144 = por %p142, %p143
      %p145 = scmp.ne.s32.totalorder %s137, %s139
      %p146 = scmp.eq.s32.totalorder %s31, 5
      %p147 = por %p145, %p146
      %p148 = scmp.ne.s32.totalorder %s139, %s140
      %p149 = scmp.eq.s32.totalorder %s31, 0
      %p150 = por %p148, %p149
      %p151 = scmp.ne.s32.totalorder %s139, %s140
      %p152 = scmp.eq.s32.totalorder %s32, 5
      %p153 = por %p151, %p152
      %p155 = scmp.ne.s32.totalorder %s140, %s154
      %p156 = scmp.eq.s32.totalorder %s32, 0
      %p157 = por %p155, %p156
      %s159 = sadd.s32 %s158, 1
      %p162 = scmp.eq.s32.totalorder %s26, 5
      %p163 = scmp.ne.s32.totalorder %s158, %s160
      %p164 = scmp.eq.s32.totalorder %s26, 0
      %p165 = por %p163, %p164
      %p166 = scmp.ne.s32.totalorder %s158, %s160
      %p167 = scmp.eq.s32.totalorder %s31, 5
      %p168 = por %p166, %p167
      %p169 = scmp.ne.s32.totalorder %s160, %s161
      %p170 = scmp.eq.s32.totalorder %s31, 0
      %p171 = por %p169, %p170
      %p172 = scmp.ne.s32.totalorder %s160, %s161
      %p173 = scmp.eq.s32.totalorder %s32, 5
      %p174 = por %p172, %p173
      %p176 = scmp.ne.s32.totalorder %s161, %s175
      %p177 = scmp.eq.s32.totalorder %s32, 0
      %p178 = por %p176, %p177
      %s179 = ssub.s32 %s33, %s45
      %s180 = ssub.s32 %s34, %s41
      %s181 = sor.u32 %s179, %s180
      %p182 = scmp.eq.s32.totalorder %s181, 0
      %s184 = sadd.s32 %s183, 1
      %s185 = scalar_select %p182, %s183, %s184
      %p188 = pneg %p182
      %p189 = scmp.eq.s32.totalorder %s26, 5
      %p190 = por %p188, %p189
      %p191 = scmp.ne.s32.totalorder %s183, %s186
      %p192 = scmp.eq.s32.totalorder %s26, 0
      %p193 = por %p191, %p192
      %p194 = scmp.ne.s32.totalorder %s183, %s186
      %p195 = scmp.eq.s32.totalorder %s31, 5
      %p196 = por %p194, %p195
      %p197 = scmp.ne.s32.totalorder %s186, %s187
      %p198 = scmp.eq.s32.totalorder %s31, 0
      %p199 = por %p197, %p198
      %p200 = scmp.ne.s32.totalorder %s186, %s187
      %p201 = scmp.eq.s32.totalorder %s32, 5
      %p202 = por %p200, %p201
      %p204 = scmp.ne.s32.totalorder %s187, %s203
      %p205 = scmp.eq.s32.totalorder %s32, 0
      %p206 = por %p204, %p205
      %s207 = ssub.s32 %s33, %s45
      %s208 = ssub.s32 %s34, %s41
      %s209 = sor.u32 %s207, %s208
      %p210 = scmp.eq.s32.totalorder %s209, 0
      %s212 = sadd.s32 %s211, 1
      %s213 = scalar_select %p210, %s211, %s212
      %p216 = pneg %p210
      %p217 = scmp.eq.s32.totalorder %s26, 5
      %p218 = por %p216, %p217
      %p219 = scmp.ne.s32.totalorder %s211, %s214
      %p220 = scmp.eq.s32.totalorder %s26, 0
      %p221 = por %p219, %p220
      %p222 = scmp.ne.s32.totalorder %s211, %s214
      %p223 = scmp.eq.s32.totalorder %s31, 5
      %p224 = por %p222, %p223
      %p225 = scmp.ne.s32.totalorder %s214, %s215
      %p226 = scmp.eq.s32.totalorder %s31, 0
      %p227 = por %p225, %p226
      %p228 = scmp.ne.s32.totalorder %s214, %s215
      %p229 = scmp.eq.s32.totalorder %s32, 5
      %p230 = por %p228, %p229
      %p232 = scmp.ne.s32.totalorder %s215, %s231
      %p233 = scmp.eq.s32.totalorder %s32, 0
      %p234 = por %p232, %p233
      %s235 = ssub.s32 %s33, %s45
      %s236 = ssub.s32 %s34, %s41
      %s237 = sor.u32 %s235, %s236
      %p238 = scmp.eq.s32.totalorder %s237, 0
      %s240 = sadd.s32 %s239, 1
      %s241 = scalar_select %p238, %s239, %s240
      %p244 = pneg %p238
      %p245 = scmp.eq.s32.totalorder %s26, 5
      %p246 = por %p244, %p245
      %p247 = scmp.ne.s32.totalorder %s239, %s242
      %p248 = scmp.eq.s32.totalorder %s26, 0
      %p249 = por %p247, %p248
      %p250 = scmp.ne.s32.totalorder %s239, %s242
      %p251 = scmp.eq.s32.totalorder %s31, 5
      %p252 = por %p250, %p251
      %p253 = scmp.ne.s32.totalorder %s242, %s243
      %p254 = scmp.eq.s32.totalorder %s31, 0
      %p255 = por %p253, %p254
      %p256 = scmp.ne.s32.totalorder %s242, %s243
      %p257 = scmp.eq.s32.totalorder %s32, 5
      %p258 = por %p256, %p257
      %p260 = scmp.ne.s32.totalorder %s243, %s259
      %p261 = scmp.eq.s32.totalorder %s32, 0
      %p262 = por %p260, %p261
      %p263 = scmp.le.s32.totalorder 1, %s26
      %p264 = scmp.lt.s32.totalorder %s26, 7
      %p265 = pnand %p263, %p264
      %p266 = pneg %p265
      // Predicated region
      $region9: #{tpu_custom_call.1} parent=5 // pred_check
        _
      $region10: #{tpu_custom_call.1} parent=5 // pred_check_branch
        %268 = sbr.rel (%p265) target = $region12
      $region11: #{tpu_custom_call.1} parent=5 // pred_region
        %s269 = ssub.s32 %s26, 1
        // Predicated region
        $region13: #{tpu_custom_call.1} parent=11 // pred_check
          %p270 = pneg %p87
        $region14: #{tpu_custom_call.1} parent=11 // pred_check_branch
          %272 = sbr.rel (%p270) target = $region16
        $region15: #{tpu_custom_call.1} parent=11 // pred_region
          %s274 = ssub.s32 1024, 1024
          %275 = vsyncadd [#allocation6], %s274
          %s276 = sshll.u32 [#allocation5], 4
          %s277 = int_to_ptr.vmem [resolvable:$true] %s276
          %282 = dma.hbm_to_vmem [thread:$0]  %s1, 1024, %s277, [#allocation6], 64, 64, 4
        $region16: #{tpu_custom_call.1} parent=11 // pred_fallthru
          _
        // Predicated region
        $region17: #{tpu_custom_call.1} parent=11 // pred_check
          %p283 = pneg %p108
        $region18: #{tpu_custom_call.1} parent=11 // pred_check_branch
          %285 = sbr.rel (%p283) target = $region20
        $region19: #{tpu_custom_call.1} parent=11 // pred_region
          _
        $region20: #{tpu_custom_call.1} parent=11 // pred_fallthru
          _
        // Predicated region
        $region21: #{tpu_custom_call.1} parent=11 // pred_check
          %p286 = pneg %p129
        $region22: #{tpu_custom_call.1} parent=11 // pred_check_branch
          %288 = sbr.rel (%p286) target = $region24
        $region23: #{tpu_custom_call.1} parent=11 // pred_region
          %s290 = ssub.s32 1024, 1024
          %291 = vsyncadd [#allocation6], %s290
          %s292 = sshll.u32 [#allocation7], 4
          %s293 = int_to_ptr.vmem [resolvable:$true] %s292
          %298 = dma.hbm_to_vmem [thread:$0]  %s3, 1024, %s293, [#allocation6], 64, 64, 4
        $region24: #{tpu_custom_call.1} parent=11 // pred_fallthru
          _
        // Predicated region
        $region25: #{tpu_custom_call.1} parent=11 // pred_check
          %p299 = pneg %p150
        $region26: #{tpu_custom_call.1} parent=11 // pred_check_branch
          %301 = sbr.rel (%p299) target = $region28
        $region27: #{tpu_custom_call.1} parent=11 // pred_region
          _
        $region28: #{tpu_custom_call.1} parent=11 // pred_fallthru
          _
        // Predicated region
        $region29: #{tpu_custom_call.1} parent=11 // pred_check
          %p302 = pneg %p171
        $region30: #{tpu_custom_call.1} parent=11 // pred_check_branch
          %304 = sbr.rel (%p302) target = $region32
        $region31: #{tpu_custom_call.1} parent=11 // pred_region
          %s306 = ssub.s32 1024, 1024
          %307 = vsyncadd [#allocation9], %s306
          %s308 = sshll.u32 [#allocation8], 4
          %s309 = int_to_ptr.vmem [resolvable:$true] %s308
          %314 = dma.hbm_to_vmem [thread:$0]  %s5, 1024, %s309, [#allocation9], 64, 64, 4
        $region32: #{tpu_custom_call.1} parent=11 // pred_fallthru
          _
      $region12: #{tpu_custom_call.1} parent=5 // pred_fallthru
        _
      %p315 = scmp.lt.s32.totalorder %s26, 6
      // Predicated region
      $region33: #{tpu_custom_call.1} parent=5 // pred_check
        %p316 = pneg %p315
      $region34: #{tpu_custom_call.1} parent=5 // pred_check_branch
        %318 = sbr.rel (%p316) target = $region36
      $region35: #{tpu_custom_call.1} parent=5 // pred_region
        // Predicated region
        $region37: #{tpu_custom_call.1} parent=35 // pred_check
          %p319 = pneg %p60
        $region38: #{tpu_custom_call.1} parent=35 // pred_check_branch
          %321 = sbr.rel (%p319) target = $region40
        $region39: #{tpu_custom_call.1} parent=35 // pred_region
          %s322 = sand.u32 %s50, 1
          %s323 = scalar_lea.sflag [#allocation3], %s322
          %s324 = sand.u32 %s50, 1
          %s325 = smul.addr %s324, 64
          %s326 = scalar_lea.vmem [#allocation2], %s325
          %s327 = smul.u32 16, %s34
          %s329 = ssub.s32 1024, 1024
          %330 = vsyncadd %s323, %s329
          %s331 = smul.addr %s33, 48
          %s332 = sadd.s32 %s327, %s331
          %s333 = smul.addr %s332, 64
          %s334 = scalar_lea.hbm %s0, %s333
          %s335 = sshll.u32 %s326, 4
          %s336 = int_to_ptr.vmem [resolvable:$true] %s335
          %341 = dma.hbm_to_vmem [thread:$0]  %s334, 1024, %s336, %s323, 64, 64, 4
        $region40: #{tpu_custom_call.1} parent=35 // pred_fallthru
          _
      $region36: #{tpu_custom_call.1} parent=5 // pred_fallthru
        _
      %p342 = scmp.le.s32.totalorder 1, %s26
      %p343 = scmp.lt.s32.totalorder %s26, 7
      %p344 = pnand %p342, %p343
      %p345 = pneg %p344
      // Predicated region
      $region41: #{tpu_custom_call.1} parent=5 // pred_check
        _
      $region42: #{tpu_custom_call.1} parent=5 // pred_check_branch
        %347 = sbr.rel (%p344) target = $region44
      $region43: #{tpu_custom_call.1} parent=5 // pred_region
        %s348 = ssub.s32 %s26, 1
        %s349 = sand.u32 %s53, 1
        %s350 = scalar_lea.sflag [#allocation3], %s349
        %s351 = sand.u32 %s53, 1
        %s352 = smul.addr %s351, 64
        %s353 = scalar_lea.vmem [#allocation2], %s352
        // Predicated region
        $region45: #{tpu_custom_call.1} parent=43 // pred_check
          %p354 = pneg %p66
        $region46: #{tpu_custom_call.1} parent=43 // pred_check_branch
          %356 = sbr.rel (%p354) target = $region48
        $region47: #{tpu_custom_call.1} parent=43 // pred_region
          %357 = dma.done %s350, 1024
        $region48: #{tpu_custom_call.1} parent=43 // pred_fallthru
          _
        // Predicated region
        $region49: #{tpu_custom_call.1} parent=43 // pred_check
          %p358 = pneg %p87
        $region50: #{tpu_custom_call.1} parent=43 // pred_check_branch
          %360 = sbr.rel (%p358) target = $region52
        $region51: #{tpu_custom_call.1} parent=43 // pred_region
          %361 = dma.done [#allocation6], 1024
        $region52: #{tpu_custom_call.1} parent=43 // pred_fallthru
          _
        // Predicated region
        $region53: #{tpu_custom_call.1} parent=43 // pred_check
          %p362 = pneg %p129
        $region54: #{tpu_custom_call.1} parent=43 // pred_check_branch
          %364 = sbr.rel (%p362) target = $region56
        $region55: #{tpu_custom_call.1} parent=43 // pred_region
          %365 = dma.done [#allocation6], 1024
        $region56: #{tpu_custom_call.1} parent=43 // pred_fallthru
          _
        // Predicated region
        $region57: #{tpu_custom_call.1} parent=43 // pred_check
          %p366 = pneg %p171
        $region58: #{tpu_custom_call.1} parent=43 // pred_check_branch
          %368 = sbr.rel (%p366) target = $region60
        $region59: #{tpu_custom_call.1} parent=43 // pred_region
          %369 = dma.done [#allocation9], 1024
        $region60: #{tpu_custom_call.1} parent=43 // pred_fallthru
          _
        %s370 = sand.u32 %s53, 1
        %s371 = scalar_lea.sflag [#allocation3], %s370
        %s372 = sand.u32 %s53, 1
        %s373 = smul.addr %s372, 64
        %s374 = scalar_lea.vmem [#allocation2], %s373
        %p375 = pneg %p66
        %p376 = pneg %p63
        %p377 = pneg %p87
        %p378 = pneg %p84
        %p379 = pneg %p108
        %p380 = pneg %p105
        %p381 = pneg %p129
        %p382 = pneg %p126
        %p383 = pneg %p150
        %p384 = pneg %p147
        %p385 = pneg %p171
        %p386 = pneg %p168
        %p387 = pneg %p199
        %p388 = pneg %p196
        %s389 = sand.u32 %s186, 1
        %s390 = scalar_lea.sflag [#allocation4], %s389
        %s391 = sand.u32 %s186, 1
        %s392 = smul.addr %s391, 64
        %s393 = scalar_lea.vmem [#allocation10], %s392
        %p394 = pneg %p227
        %p395 = pneg %p224
        %s396 = sand.u32 %s31, 1
        %s397 = scalar_lea.sflag [#allocation12], %s396
        %s398 = sand.u32 %s214, 1
        %s399 = smul.addr %s398, 64
        %s400 = scalar_lea.vmem [#allocation11], %s399
        %p401 = pneg %p255
        %p402 = pneg %p252
        %s403 = sand.u32 %s31, 1
        %s404 = scalar_lea.sflag [#allocation12], %s403
        %s405 = sand.u32 %s242, 1
        %s406 = smul.addr %s405, 64
        %s407 = scalar_lea.vmem [#allocation13], %s406
        %s408 = smul.u32 16, %s36
        %s409 = smul.u32 16, %s36
        %s410 = smul.u32 16, %s36
        %s411 = smul.u32 16, %s36
        %v413 = vld [vmem:[%s353] sm:$0xf]
        %v414 = vld [vmem:[%s353 + $0x4] sm:$0xf]
        %v415 = vld [vmem:[%s353 + $0x8] sm:$0xf]
        %v416 = vld [vmem:[%s353 + $0xc] sm:$0xf]
        %v417 = vld [vmem:[%s353 + $0x10] sm:$0xf]
        %v418 = vld [vmem:[%s353 + $0x14] sm:$0xf]
        %v419 = vld [vmem:[%s353 + $0x18] sm:$0xf]
        %v420 = vld [vmem:[%s353 + $0x1c] sm:$0xf]
        %v421 = vld [vmem:[%s353 + $0x20] sm:$0xf]
        %v422 = vld [vmem:[%s353 + $0x24] sm:$0xf]
        %v423 = vld [vmem:[%s353 + $0x28] sm:$0xf]
        %v424 = vld [vmem:[%s353 + $0x2c] sm:$0xf]
        %v425 = vld [vmem:[%s353 + $0x30] sm:$0xf]
        %v426 = vld [vmem:[%s353 + $0x34] sm:$0xf]
        %v427 = vld [vmem:[%s353 + $0x38] sm:$0xf]
        %v428 = vld [vmem:[%s353 + $0x3c] sm:$0xf]
        %v429 = vld [vmem:[#allocation5] sm:$0xf]
        %v430 = vld [vmem:[#allocation5 + $0x4] sm:$0xf]
        %v431 = vld [vmem:[#allocation5 + $0x8] sm:$0xf]
        %v432 = vld [vmem:[#allocation5 + $0xc] sm:$0xf]
        %v433 = vld [vmem:[#allocation5 + $0x10] sm:$0xf]
        %v434 = vld [vmem:[#allocation5 + $0x14] sm:$0xf]
        %v435 = vld [vmem:[#allocation5 + $0x18] sm:$0xf]
        %v436 = vld [vmem:[#allocation5 + $0x1c] sm:$0xf]
        %v437 = vld [vmem:[#allocation5 + $0x20] sm:$0xf]
        %v438 = vld [vmem:[#allocation5 + $0x24] sm:$0xf]
        %v439 = vld [vmem:[#allocation5 + $0x28] sm:$0xf]
        %v440 = vld [vmem:[#allocation5 + $0x2c] sm:$0xf]
        %v441 = vld [vmem:[#allocation5 + $0x30] sm:$0xf]
        %v442 = vld [vmem:[#allocation5 + $0x34] sm:$0xf]
        %v443 = vld [vmem:[#allocation5 + $0x38] sm:$0xf]
        %v444 = vld [vmem:[#allocation5 + $0x3c] sm:$0xf]
        %v445 = vld [vmem:[%s2] sm:$0x1]
        %v447 = vlaneseq
        %v448 = vshrl.u32 %v447, 7
        %v449 = vsub.s32 0, %v448
        %v450 = vrot.slane %v445, %v449
        %v468 = vunpack.c.l.b16 %v413
        %v469 = vunpack.c.l.b16 %v414
        %v470 = vunpack.c.l.b16 %v415
        %v471 = vunpack.c.l.b16 %v416
        %v472 = vunpack.c.l.b16 %v417
        %v473 = vunpack.c.l.b16 %v418
        %v474 = vunpack.c.l.b16 %v419
        %v475 = vunpack.c.l.b16 %v420
        %v476 = vunpack.c.l.b16 %v421
        %v477 = vunpack.c.l.b16 %v422
        %v478 = vunpack.c.l.b16 %v423
        %v479 = vunpack.c.l.b16 %v424
        %v480 = vunpack.c.l.b16 %v425
        %v481 = vunpack.c.l.b16 %v426
        %v482 = vunpack.c.l.b16 %v427
        %v483 = vunpack.c.l.b16 %v428
        %v484 = vpack.c.b16 %v469, %v468
        %v485 = vpack.c.b16 %v471, %v470
        %v486 = vpack.c.b16 %v473, %v472
        %v487 = vpack.c.b16 %v475, %v474
        %v488 = vpack.c.b16 %v477, %v476
        %v489 = vpack.c.b16 %v479, %v478
        %v490 = vpack.c.b16 %v481, %v480
        %v491 = vpack.c.b16 %v483, %v482
        %v516 = vunpack.c.l.b16 %v429
        %v517 = vunpack.c.l.b16 %v430
        %v518 = vunpack.c.l.b16 %v431
        %v519 = vunpack.c.l.b16 %v432
        %v520 = vunpack.c.l.b16 %v433
        %v521 = vunpack.c.l.b16 %v434
        %v522 = vunpack.c.l.b16 %v435
        %v523 = vunpack.c.l.b16 %v436
        %v524 = vunpack.c.l.b16 %v437
        %v525 = vunpack.c.l.b16 %v438
        %v526 = vunpack.c.l.b16 %v439
        %v527 = vunpack.c.l.b16 %v440
        %v528 = vunpack.c.l.b16 %v441
        %v529 = vunpack.c.l.b16 %v442
        %v530 = vunpack.c.l.b16 %v443
        %v531 = vunpack.c.l.b16 %v444
        %v532 = vpack.c.b16 %v517, %v516
        %v533 = vpack.c.b16 %v519, %v518
        %v534 = vpack.c.b16 %v521, %v520
        %v535 = vpack.c.b16 %v523, %v522
        %v536 = vpack.c.b16 %v525, %v524
        %v537 = vpack.c.b16 %v527, %v526
        %v538 = vpack.c.b16 %v529, %v528
        %v539 = vpack.c.b16 %v531, %v530
        %548 = vmatprep.subr.bf16.mxu0 0
        %549 = vmatpush1.bf16.msra.mxu0 %v532
        %550 = vmatprep.subr.bf16.mxu0 0
        %551 = vmatpush1.bf16.msra.mxu0 %v533
        %552 = vmatprep.subr.bf16.mxu0 0
        %553 = vmatpush1.bf16.msra.mxu0 %v534
        %554 = vmatprep.subr.bf16.mxu0 0
        %555 = vmatpush1.bf16.msra.mxu0 %v535
        %556 = vmatprep.subr.bf16.mxu0 0
        %557 = vmatpush1.bf16.msra.mxu0 %v536
        %558 = vmatprep.subr.bf16.mxu0 0
        %559 = vmatpush1.bf16.msra.mxu0 %v537
        %560 = vmatprep.subr.bf16.mxu0 0
        %561 = vmatpush1.bf16.msra.mxu0 %v538
        %562 = vmatprep.subr.bf16.mxu0 0
        %563 = vmatpush1.bf16.msra.mxu0 %v539
        %564 = vmatprep.subr.bf16.mxu0 0
        %565 = vmatpush1.bf16.msra.mxu0 0
        %566 = vmatprep.subr.bf16.mxu0 0
        %567 = vmatpush1.bf16.msra.mxu0 0
        %568 = vmatprep.subr.bf16.mxu0 0
        %569 = vmatpush1.bf16.msra.mxu0 0
        %570 = vmatprep.subr.bf16.mxu0 0
        %571 = vmatpush1.bf16.msra.mxu0 0
        %572 = vmatprep.subr.bf16.mxu0 0
        %573 = vmatpush1.bf16.msra.mxu0 0
        %574 = vmatprep.subr.bf16.mxu0 0
        %575 = vmatpush1.bf16.msra.mxu0 0
        %576 = vmatprep.subr.bf16.mxu0 0
        %577 = vmatpush1.bf16.msra.mxu0 0
        %578 = vmatprep.subr.bf16.mxu0 0
        %579 = vmatpush1.bf16.msra.mxu0 0
        %580 = vmatprep.mubr.bf16.mxu0 0
        %581 = vmatmul.mubr.bf16.gmra.mrb[0].mxu0 %v484
        %v582 = vpop.f32.mrb[0].mxu0
        %v583 = vadd.f32 %v450, %v582
        %v584 = vpop.f32.mrb[0].mxu0
        %v585 = vpop.f32.mrb[0].mxu0
        %v586 = vadd.f32 %v450, %v585
        %v587 = vpop.f32.mrb[0].mxu0
        %588 = vmatprep.mubr.bf16.mxu0 0
        %589 = vmatmul.mubr.bf16.gmra.mrb[0].mxu0 %v485
        %v590 = vpop.f32.mrb[0].mxu0
        %v591 = vadd.f32 %v450, %v590
        %v592 = vpop.f32.mrb[0].mxu0
        %v593 = vpop.f32.mrb[0].mxu0
        %v594 = vadd.f32 %v450, %v593
        %v595 = vpop.f32.mrb[0].mxu0
        %596 = vmatprep.mubr.bf16.mxu0 0
        %597 = vmatmul.mubr.bf16.gmra.mrb[0].mxu0 %v486
        %v598 = vpop.f32.mrb[0].mxu0
        %v599 = vadd.f32 %v450, %v598
        %v600 = vpop.f32.mrb[0].mxu0
        %v601 = vpop.f32.mrb[0].mxu0
        %v602 = vadd.f32 %v450, %v601
        %v603 = vpop.f32.mrb[0].mxu0
        %604 = vmatprep.mubr.bf16.mxu0 0
        %605 = vmatmul.mubr.bf16.gmra.mrb[0].mxu0 %v487
        %v606 = vpop.f32.mrb[0].mxu0
        %v607 = vadd.f32 %v450, %v606
        %v608 = vpop.f32.mrb[0].mxu0
        %v609 = vpop.f32.mrb[0].mxu0
        %v610 = vadd.f32 %v450, %v609
        %v611 = vpop.f32.mrb[0].mxu0
        %612 = vmatprep.mubr.bf16.mxu0 0
        %613 = vmatmul.mubr.bf16.gmra.mrb[0].mxu0 %v488
        %v614 = vpop.f32.mrb[0].mxu0
        %v615 = vadd.f32 %v450, %v614
        %v616 = vpop.f32.mrb[0].mxu0
        %v617 = vpop.f32.mrb[0].mxu0
        %v618 = vadd.f32 %v450, %v617
        %v619 = vpop.f32.mrb[0].mxu0
        %620 = vmatprep.mubr.bf16.mxu0 0
        %621 = vmatmul.mubr.bf16.gmra.mrb[0].mxu0 %v489
        %v622 = vpop.f32.mrb[0].mxu0
        %v623 = vadd.f32 %v450, %v622
        %v624 = vpop.f32.mrb[0].mxu0
        %v625 = vpop.f32.mrb[0].mxu0
        %v626 = vadd.f32 %v450, %v625
        %v627 = vpop.f32.mrb[0].mxu0
        %628 = vmatprep.mubr.bf16.mxu0 0
        %629 = vmatmul.mubr.bf16.gmra.mrb[0].mxu0 %v490
        %v630 = vpop.f32.mrb[0].mxu0
        %v631 = vadd.f32 %v450, %v630
        %v632 = vpop.f32.mrb[0].mxu0
        %v633 = vpop.f32.mrb[0].mxu0
        %v634 = vadd.f32 %v450, %v633
        %v635 = vpop.f32.mrb[0].mxu0
        %636 = vmatprep.mubr.bf16.mxu0 0
        %637 = vmatmul.mubr.bf16.gmra.mrb[0].mxu0 %v491
        %v638 = vpop.f32.mrb[0].mxu0
        %v639 = vadd.f32 %v450, %v638
        %v640 = vpop.f32.mrb[0].mxu0
        %v641 = vpop.f32.mrb[0].mxu0
        %v642 = vadd.f32 %v450, %v641
        %v643 = vpop.f32.mrb[0].mxu0
        %644 = vdwg.mxu0
        %vm645 = vcmp.ge.f32.partialorder %v583, 0.0
        %vm646 = vcmp.ge.f32.partialorder %v586, 0.0
        %vm647 = vcmp.ge.f32.partialorder %v591, 0.0
        %vm648 = vcmp.ge.f32.partialorder %v594, 0.0
        %vm649 = vcmp.ge.f32.partialorder %v599, 0.0
        %vm650 = vcmp.ge.f32.partialorder %v602, 0.0
        %vm651 = vcmp.ge.f32.partialorder %v607, 0.0
        %vm652 = vcmp.ge.f32.partialorder %v610, 0.0
        %vm653 = vcmp.ge.f32.partialorder %v615, 0.0
        %vm654 = vcmp.ge.f32.partialorder %v618, 0.0
        %vm655 = vcmp.ge.f32.partialorder %v623, 0.0
        %vm656 = vcmp.ge.f32.partialorder %v626, 0.0
        %vm657 = vcmp.ge.f32.partialorder %v631, 0.0
        %vm658 = vcmp.ge.f32.partialorder %v634, 0.0
        %vm659 = vcmp.ge.f32.partialorder %v639, 0.0
        %vm660 = vcmp.ge.f32.partialorder %v642, 0.0
        %v661 = vmul.f32 %v583, 0.01
        %v662 = vmul.f32 %v586, 0.01
        %v663 = vmul.f32 %v591, 0.01
        %v664 = vmul.f32 %v594, 0.01
        %v665 = vmul.f32 %v599, 0.01
        %v666 = vmul.f32 %v602, 0.01
        %v667 = vmul.f32 %v607, 0.01
        %v668 = vmul.f32 %v610, 0.01
        %v669 = vmul.f32 %v615, 0.01
        %v670 = vmul.f32 %v618, 0.01
        %v671 = vmul.f32 %v623, 0.01
        %v672 = vmul.f32 %v626, 0.01
        %v673 = vmul.f32 %v631, 0.01
        %v674 = vmul.f32 %v634, 0.01
        %v675 = vmul.f32 %v639, 0.01
        %v676 = vmul.f32 %v642, 0.01
        %v677 = vsel %vm645, %v583, %v661
        %v678 = vsel %vm646, %v586, %v662
        %v679 = vsel %vm647, %v591, %v663
        %v680 = vsel %vm648, %v594, %v664
        %v681 = vsel %vm649, %v599, %v665
        %v682 = vsel %vm650, %v602, %v666
        %v683 = vsel %vm651, %v607, %v667
        %v684 = vsel %vm652, %v610, %v668
        %v685 = vsel %vm653, %v615, %v669
        %v686 = vsel %vm654, %v618, %v670
        %v687 = vsel %vm655, %v623, %v671
        %v688 = vsel %vm656, %v626, %v672
        %v689 = vsel %vm657, %v631, %v673
        %v690 = vsel %vm658, %v634, %v674
        %v691 = vsel %vm659, %v639, %v675
        %v692 = vsel %vm660, %v642, %v676
        %v693 = vpack.c.bf16 %v678, %v677
        %v694 = vpack.c.bf16 %v680, %v679
        %v695 = vpack.c.bf16 %v682, %v681
        %v696 = vpack.c.bf16 %v684, %v683
        %v697 = vpack.c.bf16 %v686, %v685
        %v698 = vpack.c.bf16 %v688, %v687
        %v699 = vpack.c.bf16 %v690, %v689
        %v700 = vpack.c.bf16 %v692, %v691
        %v709 = vunpack.c.l.b16 %v693
        %v710 = vunpack.c.h.b16 %v693
        %v711 = vunpack.c.l.b16 %v694
        %v712 = vunpack.c.h.b16 %v694
        %v713 = vunpack.c.l.b16 %v695
        %v714 = vunpack.c.h.b16 %v695
        %v715 = vunpack.c.l.b16 %v696
        %v716 = vunpack.c.h.b16 %v696
        %v717 = vunpack.c.l.b16 %v697
        %v718 = vunpack.c.h.b16 %v697
        %v719 = vunpack.c.l.b16 %v698
        %v720 = vunpack.c.h.b16 %v698
        %v721 = vunpack.c.l.b16 %v699
        %v722 = vunpack.c.h.b16 %v699
        %v723 = vunpack.c.l.b16 %v700
        %v724 = vunpack.c.h.b16 %v700
        %v725 = vpack.c.b16 %v709, %v709
        %v726 = vpack.c.b16 %v710, %v710
        %v727 = vpack.c.b16 %v711, %v711
        %v728 = vpack.c.b16 %v712, %v712
        %v729 = vpack.c.b16 %v713, %v713
        %v730 = vpack.c.b16 %v714, %v714
        %v731 = vpack.c.b16 %v715, %v715
        %v732 = vpack.c.b16 %v716, %v716
        %v733 = vpack.c.b16 %v717, %v717
        %v734 = vpack.c.b16 %v718, %v718
        %v735 = vpack.c.b16 %v719, %v719
        %v736 = vpack.c.b16 %v720, %v720
        %v737 = vpack.c.b16 %v721, %v721
        %v738 = vpack.c.b16 %v722, %v722
        %v739 = vpack.c.b16 %v723, %v723
        %v740 = vpack.c.b16 %v724, %v724
        %757 = vst [vmem:[%s393] sm:$0xf] %v725
        %758 = vst [vmem:[%s393 + $0x4] sm:$0xf] %v726
        %759 = vst [vmem:[%s393 + $0x8] sm:$0xf] %v727
        %760 = vst [vmem:[%s393 + $0xc] sm:$0xf] %v728
        %761 = vst [vmem:[%s393 + $0x10] sm:$0xf] %v729
        %762 = vst [vmem:[%s393 + $0x14] sm:$0xf] %v730
        %763 = vst [vmem:[%s393 + $0x18] sm:$0xf] %v731
        %764 = vst [vmem:[%s393 + $0x1c] sm:$0xf] %v732
        %765 = vst [vmem:[%s393 + $0x20] sm:$0xf] %v733
        %766 = vst [vmem:[%s393 + $0x24] sm:$0xf] %v734
        %767 = vst [vmem:[%s393 + $0x28] sm:$0xf] %v735
        %768 = vst [vmem:[%s393 + $0x2c] sm:$0xf] %v736
        %769 = vst [vmem:[%s393 + $0x30] sm:$0xf] %v737
        %770 = vst [vmem:[%s393 + $0x34] sm:$0xf] %v738
        %771 = vst [vmem:[%s393 + $0x38] sm:$0xf] %v739
        %772 = vst [vmem:[%s393 + $0x3c] sm:$0xf] %v740
        %v773 = vld [vmem:[#allocation7] sm:$0xf]
        %v774 = vld [vmem:[#allocation7 + $0x4] sm:$0xf]
        %v775 = vld [vmem:[#allocation7 + $0x8] sm:$0xf]
        %v776 = vld [vmem:[#allocation7 + $0xc] sm:$0xf]
        %v777 = vld [vmem:[#allocation7 + $0x10] sm:$0xf]
        %v778 = vld [vmem:[#allocation7 + $0x14] sm:$0xf]
        %v779 = vld [vmem:[#allocation7 + $0x18] sm:$0xf]
        %v780 = vld [vmem:[#allocation7 + $0x1c] sm:$0xf]
        %v781 = vld [vmem:[#allocation7 + $0x20] sm:$0xf]
        %v782 = vld [vmem:[#allocation7 + $0x24] sm:$0xf]
        %v783 = vld [vmem:[#allocation7 + $0x28] sm:$0xf]
        %v784 = vld [vmem:[#allocation7 + $0x2c] sm:$0xf]
        %v785 = vld [vmem:[#allocation7 + $0x30] sm:$0xf]
        %v786 = vld [vmem:[#allocation7 + $0x34] sm:$0xf]
        %v787 = vld [vmem:[#allocation7 + $0x38] sm:$0xf]
        %v788 = vld [vmem:[#allocation7 + $0x3c] sm:$0xf]
        %v789 = vld [vmem:[%s4] sm:$0x1]
        %v791 = vlaneseq
        %v792 = vshrl.u32 %v791, 7
        %v793 = vsub.s32 0, %v792
        %v794 = vrot.slane %v789, %v793
        %v812 = vunpack.c.l.b16 %v773
        %v813 = vunpack.c.l.b16 %v774
        %v814 = vunpack.c.l.b16 %v775
        %v815 = vunpack.c.l.b16 %v776
        %v816 = vunpack.c.l.b16 %v777
        %v817 = vunpack.c.l.b16 %v778
        %v818 = vunpack.c.l.b16 %v779
        %v819 = vunpack.c.l.b16 %v780
        %v820 = vunpack.c.l.b16 %v781
        %v821 = vunpack.c.l.b16 %v782
        %v822 = vunpack.c.l.b16 %v783
        %v823 = vunpack.c.l.b16 %v784
        %v824 = vunpack.c.l.b16 %v785
        %v825 = vunpack.c.l.b16 %v786
        %v826 = vunpack.c.l.b16 %v787
        %v827 = vunpack.c.l.b16 %v788
        %v828 = vpack.c.b16 %v813, %v812
        %v829 = vpack.c.b16 %v815, %v814
        %v830 = vpack.c.b16 %v817, %v816
        %v831 = vpack.c.b16 %v819, %v818
        %v832 = vpack.c.b16 %v821, %v820
        %v833 = vpack.c.b16 %v823, %v822
        %v834 = vpack.c.b16 %v825, %v824
        %v835 = vpack.c.b16 %v827, %v826
        %844 = vmatprep.subr.bf16.mxu0 0
        %845 = vmatpush1.bf16.msra.mxu0 %v828
        %846 = vmatprep.subr.bf16.mxu0 0
        %847 = vmatpush1.bf16.msra.mxu0 %v829
        %848 = vmatprep.subr.bf16.mxu0 0
        %849 = vmatpush1.bf16.msra.mxu0 %v830
        %850 = vmatprep.subr.bf16.mxu0 0
        %851 = vmatpush1.bf16.msra.mxu0 %v831
        %852 = vmatprep.subr.bf16.mxu0 0
        %853 = vmatpush1.bf16.msra.mxu0 %v832
        %854 = vmatprep.subr.bf16.mxu0 0
        %855 = vmatpush1.bf16.msra.mxu0 %v833
        %856 = vmatprep.subr.bf16.mxu0 0
        %857 = vmatpush1.bf16.msra.mxu0 %v834
        %858 = vmatprep.subr.bf16.mxu0 0
        %859 = vmatpush1.bf16.msra.mxu0 %v835
        %860 = vmatprep.subr.bf16.mxu0 0
        %861 = vmatpush1.bf16.msra.mxu0 0
        %862 = vmatprep.subr.bf16.mxu0 0
        %863 = vmatpush1.bf16.msra.mxu0 0
        %864 = vmatprep.subr.bf16.mxu0 0
        %865 = vmatpush1.bf16.msra.mxu0 0
        %866 = vmatprep.subr.bf16.mxu0 0
        %867 = vmatpush1.bf16.msra.mxu0 0
        %868 = vmatprep.subr.bf16.mxu0 0
        %869 = vmatpush1.bf16.msra.mxu0 0
        %870 = vmatprep.subr.bf16.mxu0 0
        %871 = vmatpush1.bf16.msra.mxu0 0
        %872 = vmatprep.subr.bf16.mxu0 0
        %873 = vmatpush1.bf16.msra.mxu0 0
        %874 = vmatprep.subr.bf16.mxu0 0
        %875 = vmatpush1.bf16.msra.mxu0 0
        %876 = vmatprep.mubr.bf16.mxu0 0
        %877 = vmatmul.mubr.bf16.gmra.mrb[0].mxu0 %v484
        %v878 = vpop.f32.mrb[0].mxu0
        %v879 = vadd.f32 %v794, %v878
        %v880 = vpop.f32.mrb[0].mxu0
        %v881 = vpop.f32.mrb[0].mxu0
        %v882 = vadd.f32 %v794, %v881
        %v883 = vpop.f32.mrb[0].mxu0
        %884 = vmatprep.mubr.bf16.mxu0 0
        %885 = vmatmul.mubr.bf16.gmra.mrb[0].mxu0 %v485
        %v886 = vpop.f32.mrb[0].mxu0
        %v887 = vadd.f32 %v794, %v886
        %v888 = vpop.f32.mrb[0].mxu0
        %v889 = vpop.f32.mrb[0].mxu0
        %v890 = vadd.f32 %v794, %v889
        %v891 = vpop.f32.mrb[0].mxu0
        %892 = vmatprep.mubr.bf16.mxu0 0
        %893 = vmatmul.mubr.bf16.gmra.mrb[0].mxu0 %v486
        %v894 = vpop.f32.mrb[0].mxu0
        %v895 = vadd.f32 %v794, %v894
        %v896 = vpop.f32.mrb[0].mxu0
        %v897 = vpop.f32.mrb[0].mxu0
        %v898 = vadd.f32 %v794, %v897
        %v899 = vpop.f32.mrb[0].mxu0
        %900 = vmatprep.mubr.bf16.mxu0 0
        %901 = vmatmul.mubr.bf16.gmra.mrb[0].mxu0 %v487
        %v902 = vpop.f32.mrb[0].mxu0
        %v903 = vadd.f32 %v794, %v902
        %v904 = vpop.f32.mrb[0].mxu0
        %v905 = vpop.f32.mrb[0].mxu0
        %v906 = vadd.f32 %v794, %v905
        %v907 = vpop.f32.mrb[0].mxu0
        %908 = vmatprep.mubr.bf16.mxu0 0
        %909 = vmatmul.mubr.bf16.gmra.mrb[0].mxu0 %v488
        %v910 = vpop.f32.mrb[0].mxu0
        %v911 = vadd.f32 %v794, %v910
        %v912 = vpop.f32.mrb[0].mxu0
        %v913 = vpop.f32.mrb[0].mxu0
        %v914 = vadd.f32 %v794, %v913
        %v915 = vpop.f32.mrb[0].mxu0
        %916 = vmatprep.mubr.bf16.mxu0 0
        %917 = vmatmul.mubr.bf16.gmra.mrb[0].mxu0 %v489
        %v918 = vpop.f32.mrb[0].mxu0
        %v919 = vadd.f32 %v794, %v918
        %v920 = vpop.f32.mrb[0].mxu0
        %v921 = vpop.f32.mrb[0].mxu0
        %v922 = vadd.f32 %v794, %v921
        %v923 = vpop.f32.mrb[0].mxu0
        %924 = vmatprep.mubr.bf16.mxu0 0
        %925 = vmatmul.mubr.bf16.gmra.mrb[0].mxu0 %v490
        %v926 = vpop.f32.mrb[0].mxu0
        %v927 = vadd.f32 %v794, %v926
        %v928 = vpop.f32.mrb[0].mxu0
        %v929 = vpop.f32.mrb[0].mxu0
        %v930 = vadd.f32 %v794, %v929
        %v931 = vpop.f32.mrb[0].mxu0
        %932 = vmatprep.mubr.bf16.mxu0 0
        %933 = vmatmul.mubr.bf16.gmra.mrb[0].mxu0 %v491
        %v934 = vpop.f32.mrb[0].mxu0
        %v935 = vadd.f32 %v794, %v934
        %v936 = vpop.f32.mrb[0].mxu0
        %v937 = vpop.f32.mrb[0].mxu0
        %v938 = vadd.f32 %v794, %v937
        %v939 = vpop.f32.mrb[0].mxu0
        %940 = vdwg.mxu0
        %v941 = vpack.c.bf16 %v882, %v879
        %v942 = vpack.c.bf16 %v890, %v887
        %v943 = vpack.c.bf16 %v898, %v895
        %v944 = vpack.c.bf16 %v906, %v903
        %v945 = vpack.c.bf16 %v914, %v911
        %v946 = vpack.c.bf16 %v922, %v919
        %v947 = vpack.c.bf16 %v930, %v927
        %v948 = vpack.c.bf16 %v938, %v935
        %v957 = vunpack.c.l.b16 %v941
        %v958 = vunpack.c.h.b16 %v941
        %v959 = vunpack.c.l.b16 %v942
        %v960 = vunpack.c.h.b16 %v942
        %v961 = vunpack.c.l.b16 %v943
        %v962 = vunpack.c.h.b16 %v943
        %v963 = vunpack.c.l.b16 %v944
        %v964 = vunpack.c.h.b16 %v944
        %v965 = vunpack.c.l.b16 %v945
        %v966 = vunpack.c.h.b16 %v945
        %v967 = vunpack.c.l.b16 %v946
        %v968 = vunpack.c.h.b16 %v946
        %v969 = vunpack.c.l.b16 %v947
        %v970 = vunpack.c.h.b16 %v947
        %v971 = vunpack.c.l.b16 %v948
        %v972 = vunpack.c.h.b16 %v948
        %v973 = vpack.c.b16 %v957, %v957
        %v974 = vpack.c.b16 %v958, %v958
        %v975 = vpack.c.b16 %v959, %v959
        %v976 = vpack.c.b16 %v960, %v960
        %v977 = vpack.c.b16 %v961, %v961
        %v978 = vpack.c.b16 %v962, %v962
        %v979 = vpack.c.b16 %v963, %v963
        %v980 = vpack.c.b16 %v964, %v964
        %v981 = vpack.c.b16 %v965, %v965
        %v982 = vpack.c.b16 %v966, %v966
        %v983 = vpack.c.b16 %v967, %v967
        %v984 = vpack.c.b16 %v968, %v968
        %v985 = vpack.c.b16 %v969, %v969
        %v986 = vpack.c.b16 %v970, %v970
        %v987 = vpack.c.b16 %v971, %v971
        %v988 = vpack.c.b16 %v972, %v972
        %1005 = vst [vmem:[%s400] sm:$0xf] %v973
        %1006 = vst [vmem:[%s400 + $0x4] sm:$0xf] %v974
        %1007 = vst [vmem:[%s400 + $0x8] sm:$0xf] %v975
        %1008 = vst [vmem:[%s400 + $0xc] sm:$0xf] %v976
        %1009 = vst [vmem:[%s400 + $0x10] sm:$0xf] %v977
        %1010 = vst [vmem:[%s400 + $0x14] sm:$0xf] %v978
        %1011 = vst [vmem:[%s400 + $0x18] sm:$0xf] %v979
        %1012 = vst [vmem:[%s400 + $0x1c] sm:$0xf] %v980
        %1013 = vst [vmem:[%s400 + $0x20] sm:$0xf] %v981
        %1014 = vst [vmem:[%s400 + $0x24] sm:$0xf] %v982
        %1015 = vst [vmem:[%s400 + $0x28] sm:$0xf] %v983
        %1016 = vst [vmem:[%s400 + $0x2c] sm:$0xf] %v984
        %1017 = vst [vmem:[%s400 + $0x30] sm:$0xf] %v985
        %1018 = vst [vmem:[%s400 + $0x34] sm:$0xf] %v986
        %1019 = vst [vmem:[%s400 + $0x38] sm:$0xf] %v987
        %1020 = vst [vmem:[%s400 + $0x3c] sm:$0xf] %v988
        %v1021 = vld [vmem:[#allocation8] sm:$0xf]
        %v1022 = vld [vmem:[#allocation8 + $0x4] sm:$0xf]
        %v1023 = vld [vmem:[#allocation8 + $0x8] sm:$0xf]
        %v1024 = vld [vmem:[#allocation8 + $0xc] sm:$0xf]
        %v1025 = vld [vmem:[#allocation8 + $0x10] sm:$0xf]
        %v1026 = vld [vmem:[#allocation8 + $0x14] sm:$0xf]
        %v1027 = vld [vmem:[#allocation8 + $0x18] sm:$0xf]
        %v1028 = vld [vmem:[#allocation8 + $0x1c] sm:$0xf]
        %v1029 = vld [vmem:[#allocation8 + $0x20] sm:$0xf]
        %v1030 = vld [vmem:[#allocation8 + $0x24] sm:$0xf]
        %v1031 = vld [vmem:[#allocation8 + $0x28] sm:$0xf]
        %v1032 = vld [vmem:[#allocation8 + $0x2c] sm:$0xf]
        %v1033 = vld [vmem:[#allocation8 + $0x30] sm:$0xf]
        %v1034 = vld [vmem:[#allocation8 + $0x34] sm:$0xf]
        %v1035 = vld [vmem:[#allocation8 + $0x38] sm:$0xf]
        %v1036 = vld [vmem:[#allocation8 + $0x3c] sm:$0xf]
        %v1053 = vunpack.c.l.b16 %v1021
        %v1054 = vunpack.c.l.b16 %v1022
        %v1055 = vunpack.c.l.b16 %v1023
        %v1056 = vunpack.c.l.b16 %v1024
        %v1057 = vunpack.c.l.b16 %v1025
        %v1058 = vunpack.c.l.b16 %v1026
        %v1059 = vunpack.c.l.b16 %v1027
        %v1060 = vunpack.c.l.b16 %v1028
        %v1061 = vunpack.c.l.b16 %v1029
        %v1062 = vunpack.c.l.b16 %v1030
        %v1063 = vunpack.c.l.b16 %v1031
        %v1064 = vunpack.c.l.b16 %v1032
        %v1065 = vunpack.c.l.b16 %v1033
        %v1066 = vunpack.c.l.b16 %v1034
        %v1067 = vunpack.c.l.b16 %v1035
        %v1068 = vunpack.c.l.b16 %v1036
        %v1069 = vpack.c.b16 %v1054, %v1053
        %v1070 = vpack.c.b16 %v1056, %v1055
        %v1071 = vpack.c.b16 %v1058, %v1057
        %v1072 = vpack.c.b16 %v1060, %v1059
        %v1073 = vpack.c.b16 %v1062, %v1061
        %v1074 = vpack.c.b16 %v1064, %v1063
        %v1075 = vpack.c.b16 %v1066, %v1065
        %v1076 = vpack.c.b16 %v1068, %v1067
        %1085 = vmatprep.subr.bf16.mxu0 0
        %1086 = vmatpush1.bf16.msra.mxu0 %v1069
        %1087 = vmatprep.subr.bf16.mxu0 0
        %1088 = vmatpush1.bf16.msra.mxu0 %v1070
        %1089 = vmatprep.subr.bf16.mxu0 0
        %1090 = vmatpush1.bf16.msra.mxu0 %v1071
        %1091 = vmatprep.subr.bf16.mxu0 0
        %1092 = vmatpush1.bf16.msra.mxu0 %v1072
        %1093 = vmatprep.subr.bf16.mxu0 0
        %1094 = vmatpush1.bf16.msra.mxu0 %v1073
        %1095 = vmatprep.subr.bf16.mxu0 0
        %1096 = vmatpush1.bf16.msra.mxu0 %v1074
        %1097 = vmatprep.subr.bf16.mxu0 0
        %1098 = vmatpush1.bf16.msra.mxu0 %v1075
        %1099 = vmatprep.subr.bf16.mxu0 0
        %1100 = vmatpush1.bf16.msra.mxu0 %v1076
        %1101 = vmatprep.subr.bf16.mxu0 0
        %1102 = vmatpush1.bf16.msra.mxu0 0
        %1103 = vmatprep.subr.bf16.mxu0 0
        %1104 = vmatpush1.bf16.msra.mxu0 0
        %1105 = vmatprep.subr.bf16.mxu0 0
        %1106 = vmatpush1.bf16.msra.mxu0 0
        %1107 = vmatprep.subr.bf16.mxu0 0
        %1108 = vmatpush1.bf16.msra.mxu0 0
        %1109 = vmatprep.subr.bf16.mxu0 0
        %1110 = vmatpush1.bf16.msra.mxu0 0
        %1111 = vmatprep.subr.bf16.mxu0 0
        %1112 = vmatpush1.bf16.msra.mxu0 0
        %1113 = vmatprep.subr.bf16.mxu0 0
        %1114 = vmatpush1.bf16.msra.mxu0 0
        %1115 = vmatprep.subr.bf16.mxu0 0
        %1116 = vmatpush1.bf16.msra.mxu0 0
        %1117 = vmatprep.mubr.bf16.mxu0 0
        %1118 = vmatmul.mubr.bf16.gmra.mrb[0].mxu0 %v484
        %v1119 = vpop.f32.mrb[0].mxu0
        %v1120 = vadd.f32 0.0, %v1119
        %v1121 = vpop.f32.mrb[0].mxu0
        %v1122 = vpop.f32.mrb[0].mxu0
        %v1123 = vadd.f32 0.0, %v1122
        %v1124 = vpop.f32.mrb[0].mxu0
        %1125 = vmatprep.mubr.bf16.mxu0 0
        %1126 = vmatmul.mubr.bf16.gmra.mrb[0].mxu0 %v485
        %v1127 = vpop.f32.mrb[0].mxu0
        %v1128 = vadd.f32 0.0, %v1127
        %v1129 = vpop.f32.mrb[0].mxu0
        %v1130 = vpop.f32.mrb[0].mxu0
        %v1131 = vadd.f32 0.0, %v1130
        %v1132 = vpop.f32.mrb[0].mxu0
        %1133 = vmatprep.mubr.bf16.mxu0 0
        %1134 = vmatmul.mubr.bf16.gmra.mrb[0].mxu0 %v486
        %v1135 = vpop.f32.mrb[0].mxu0
        %v1136 = vadd.f32 0.0, %v1135
        %v1137 = vpop.f32.mrb[0].mxu0
        %v1138 = vpop.f32.mrb[0].mxu0
        %v1139 = vadd.f32 0.0, %v1138
        %v1140 = vpop.f32.mrb[0].mxu0
        %1141 = vmatprep.mubr.bf16.mxu0 0
        %1142 = vmatmul.mubr.bf16.gmra.mrb[0].mxu0 %v487
        %v1143 = vpop.f32.mrb[0].mxu0
        %v1144 = vadd.f32 0.0, %v1143
        %v1145 = vpop.f32.mrb[0].mxu0
        %v1146 = vpop.f32.mrb[0].mxu0
        %v1147 = vadd.f32 0.0, %v1146
        %v1148 = vpop.f32.mrb[0].mxu0
        %1149 = vmatprep.mubr.bf16.mxu0 0
        %1150 = vmatmul.mubr.bf16.gmra.mrb[0].mxu0 %v488
        %v1151 = vpop.f32.mrb[0].mxu0
        %v1152 = vadd.f32 0.0, %v1151
        %v1153 = vpop.f32.mrb[0].mxu0
        %v1154 = vpop.f32.mrb[0].mxu0
        %v1155 = vadd.f32 0.0, %v1154
        %v1156 = vpop.f32.mrb[0].mxu0
        %1157 = vmatprep.mubr.bf16.mxu0 0
        %1158 = vmatmul.mubr.bf16.gmra.mrb[0].mxu0 %v489
        %v1159 = vpop.f32.mrb[0].mxu0
        %v1160 = vadd.f32 0.0, %v1159
        %v1161 = vpop.f32.mrb[0].mxu0
        %v1162 = vpop.f32.mrb[0].mxu0
        %v1163 = vadd.f32 0.0, %v1162
        %v1164 = vpop.f32.mrb[0].mxu0
        %1165 = vmatprep.mubr.bf16.mxu0 0
        %1166 = vmatmul.mubr.bf16.gmra.mrb[0].mxu0 %v490
        %v1167 = vpop.f32.mrb[0].mxu0
        %v1168 = vadd.f32 0.0, %v1167
        %v1169 = vpop.f32.mrb[0].mxu0
        %v1170 = vpop.f32.mrb[0].mxu0
        %v1171 = vadd.f32 0.0, %v1170
        %v1172 = vpop.f32.mrb[0].mxu0
        %1173 = vmatprep.mubr.bf16.mxu0 0
        %1174 = vmatmul.mubr.bf16.gmra.mrb[0].mxu0 %v491
        %v1175 = vpop.f32.mrb[0].mxu0
        %v1176 = vadd.f32 0.0, %v1175
        %v1177 = vpop.f32.mrb[0].mxu0
        %v1178 = vpop.f32.mrb[0].mxu0
        %v1179 = vadd.f32 0.0, %v1178
        %v1180 = vpop.f32.mrb[0].mxu0
        %1181 = vdwg.mxu0
        %v1182 = vpack.c.bf16 %v1123, %v1120
        %v1183 = vpack.c.bf16 %v1131, %v1128
        %v1184 = vpack.c.bf16 %v1139, %v1136
        %v1185 = vpack.c.bf16 %v1147, %v1144
        %v1186 = vpack.c.bf16 %v1155, %v1152
        %v1187 = vpack.c.bf16 %v1163, %v1160
        %v1188 = vpack.c.bf16 %v1171, %v1168
        %v1189 = vpack.c.bf16 %v1179, %v1176
        %v1198 = vunpack.c.l.b16 %v1182
        %v1199 = vunpack.c.h.b16 %v1182
        %v1200 = vunpack.c.l.b16 %v1183
        %v1201 = vunpack.c.h.b16 %v1183
        %v1202 = vunpack.c.l.b16 %v1184
        %v1203 = vunpack.c.h.b16 %v1184
        %v1204 = vunpack.c.l.b16 %v1185
        %v1205 = vunpack.c.h.b16 %v1185
        %v1206 = vunpack.c.l.b16 %v1186
        %v1207 = vunpack.c.h.b16 %v1186
        %v1208 = vunpack.c.l.b16 %v1187
        %v1209 = vunpack.c.h.b16 %v1187
        %v1210 = vunpack.c.l.b16 %v1188
        %v1211 = vunpack.c.h.b16 %v1188
        %v1212 = vunpack.c.l.b16 %v1189
        %v1213 = vunpack.c.h.b16 %v1189
        %v1214 = vpack.c.b16 %v1198, %v1198
        %v1215 = vpack.c.b16 %v1199, %v1199
        %v1216 = vpack.c.b16 %v1200, %v1200
        %v1217 = vpack.c.b16 %v1201, %v1201
        %v1218 = vpack.c.b16 %v1202, %v1202
        %v1219 = vpack.c.b16 %v1203, %v1203
        %v1220 = vpack.c.b16 %v1204, %v1204
        %v1221 = vpack.c.b16 %v1205, %v1205
        %v1222 = vpack.c.b16 %v1206, %v1206
        %v1223 = vpack.c.b16 %v1207, %v1207
        %v1224 = vpack.c.b16 %v1208, %v1208
        %v1225 = vpack.c.b16 %v1209, %v1209
        %v1226 = vpack.c.b16 %v1210, %v1210
        %v1227 = vpack.c.b16 %v1211, %v1211
        %v1228 = vpack.c.b16 %v1212, %v1212
        %v1229 = vpack.c.b16 %v1213, %v1213
        %1246 = vst [vmem:[%s407] sm:$0xf] %v1214
        %1247 = vst [vmem:[%s407 + $0x4] sm:$0xf] %v1215
        %1248 = vst [vmem:[%s407 + $0x8] sm:$0xf] %v1216
        %1249 = vst [vmem:[%s407 + $0xc] sm:$0xf] %v1217
        %1250 = vst [vmem:[%s407 + $0x10] sm:$0xf] %v1218
        %1251 = vst [vmem:[%s407 + $0x14] sm:$0xf] %v1219
        %1252 = vst [vmem:[%s407 + $0x18] sm:$0xf] %v1220
        %1253 = vst [vmem:[%s407 + $0x1c] sm:$0xf] %v1221
        %1254 = vst [vmem:[%s407 + $0x20] sm:$0xf] %v1222
        %1255 = vst [vmem:[%s407 + $0x24] sm:$0xf] %v1223
        %1256 = vst [vmem:[%s407 + $0x28] sm:$0xf] %v1224
        %1257 = vst [vmem:[%s407 + $0x2c] sm:$0xf] %v1225
        %1258 = vst [vmem:[%s407 + $0x30] sm:$0xf] %v1226
        %1259 = vst [vmem:[%s407 + $0x34] sm:$0xf] %v1227
        %1260 = vst [vmem:[%s407 + $0x38] sm:$0xf] %v1228
        %1261 = vst [vmem:[%s407 + $0x3c] sm:$0xf] %v1229
        %s1262 = sand.u32 %s186, 1
        %s1263 = scalar_lea.sflag [#allocation4], %s1262
        %s1264 = sand.u32 %s186, 1
        %s1265 = smul.addr %s1264, 64
        %s1266 = scalar_lea.vmem [#allocation10], %s1265
        %s1267 = sand.u32 %s31, 1
        %s1268 = scalar_lea.sflag [#allocation12], %s1267
        %s1269 = sand.u32 %s214, 1
        %s1270 = smul.addr %s1269, 64
        %s1271 = scalar_lea.vmem [#allocation11], %s1270
        %s1272 = sand.u32 %s31, 1
        %s1273 = scalar_lea.sflag [#allocation12], %s1272
        %s1274 = sand.u32 %s242, 1
        %s1275 = smul.addr %s1274, 64
        %s1276 = scalar_lea.vmem [#allocation13], %s1275
        // Predicated region
        $region61: #{tpu_custom_call.1} parent=43 // pred_check
          %p1277 = pneg %p196
        $region62: #{tpu_custom_call.1} parent=43 // pred_check_branch
          %1279 = sbr.rel (%p1277) target = $region64
        $region63: #{tpu_custom_call.1} parent=43 // pred_region
          %s1280 = smul.u32 16, %s36
          %s1282 = ssub.s32 1024, 1024
          %1283 = vsyncadd %s1263, %s1282
          %s1284 = smul.addr %s35, 48
          %s1285 = sadd.s32 %s1280, %s1284
          %s1286 = smul.addr %s1285, 64
          %s1287 = scalar_lea.hbm %s6, %s1286
          %s1288 = sshll.u32 %s1266, 4
          %s1289 = int_to_ptr.vmem [resolvable:$true] %s1288
          %1294 = dma.vmem_to_hbm [thread:$0]  %s1289, 1024, %s1287, %s1263, 64, 64, 4
        $region64: #{tpu_custom_call.1} parent=43 // pred_fallthru
          _
        // Predicated region
        $region65: #{tpu_custom_call.1} parent=43 // pred_check
          %p1295 = pneg %p224
        $region66: #{tpu_custom_call.1} parent=43 // pred_check_branch
          %1297 = sbr.rel (%p1295) target = $region68
        $region67: #{tpu_custom_call.1} parent=43 // pred_region
          %s1298 = smul.u32 16, %s36
          %s1300 = ssub.s32 1024, 1024
          %1301 = vsyncadd %s1268, %s1300
          %s1302 = smul.addr %s35, 48
          %s1303 = sadd.s32 %s1298, %s1302
          %s1304 = smul.addr %s1303, 64
          %s1305 = scalar_lea.hbm %s7, %s1304
          %s1306 = sshll.u32 %s1271, 4
          %s1307 = int_to_ptr.vmem [resolvable:$true] %s1306
          %1312 = dma.vmem_to_hbm [thread:$0]  %s1307, 1024, %s1305, %s1268, 64, 64, 4
        $region68: #{tpu_custom_call.1} parent=43 // pred_fallthru
          _
        // Predicated region
        $region69: #{tpu_custom_call.1} parent=43 // pred_check
          %p1313 = pneg %p252
        $region70: #{tpu_custom_call.1} parent=43 // pred_check_branch
          %1315 = sbr.rel (%p1313) target = $region72
        $region71: #{tpu_custom_call.1} parent=43 // pred_region
          %s1316 = smul.u32 16, %s36
          %s1318 = ssub.s32 1024, 1024
          %1319 = vsyncadd %s1273, %s1318
          %s1320 = smul.addr %s35, 48
          %s1321 = sadd.s32 %s1316, %s1320
          %s1322 = smul.addr %s1321, 64
          %s1323 = scalar_lea.hbm %s8, %s1322
          %s1324 = sshll.u32 %s1276, 4
          %s1325 = int_to_ptr.vmem [resolvable:$true] %s1324
          %1330 = dma.vmem_to_hbm [thread:$0]  %s1325, 1024, %s1323, %s1273, 64, 64, 4
        $region72: #{tpu_custom_call.1} parent=43 // pred_fallthru
          _
      $region44: #{tpu_custom_call.1} parent=5 // pred_fallthru
        _
      %p1331 = scmp.le.s32.totalorder 2, %s26
      // Predicated region
      $region73: #{tpu_custom_call.1} parent=5 // pred_check
        %p1332 = pneg %p1331
      $region74: #{tpu_custom_call.1} parent=5 // pred_check_branch
        %1334 = sbr.rel (%p1332) target = $region76
      $region75: #{tpu_custom_call.1} parent=5 // pred_region
        %s1335 = ssub.s32 %s26, 2
        // Predicated region
        $region77: #{tpu_custom_call.1} parent=75 // pred_check
          %p1336 = pneg %p202
        $region78: #{tpu_custom_call.1} parent=75 // pred_check_branch
          %1338 = sbr.rel (%p1336) target = $region80
        $region79: #{tpu_custom_call.1} parent=75 // pred_region
          %s1339 = sand.u32 %s187, 1
          %s1340 = scalar_lea.sflag [#allocation4], %s1339
          %s1341 = sand.u32 %s187, 1
          %s1342 = smul.addr %s1341, 64
          %s1343 = scalar_lea.vmem [#allocation10], %s1342
          %1344 = dma.done %s1340, 1024
        $region80: #{tpu_custom_call.1} parent=75 // pred_fallthru
          _
        // Predicated region
        $region81: #{tpu_custom_call.1} parent=75 // pred_check
          %p1345 = pneg %p230
        $region82: #{tpu_custom_call.1} parent=75 // pred_check_branch
          %1347 = sbr.rel (%p1345) target = $region84
        $region83: #{tpu_custom_call.1} parent=75 // pred_region
          %s1348 = sand.u32 %s32, 1
          %s1349 = scalar_lea.sflag [#allocation12], %s1348
          %s1350 = sand.u32 %s215, 1
          %s1351 = smul.addr %s1350, 64
          %s1352 = scalar_lea.vmem [#allocation11], %s1351
          %1353 = dma.done %s1349, 1024
        $region84: #{tpu_custom_call.1} parent=75 // pred_fallthru
          _
        // Predicated region
        $region85: #{tpu_custom_call.1} parent=75 // pred_check
          %p1354 = pneg %p258
        $region86: #{tpu_custom_call.1} parent=75 // pred_check_branch
          %1356 = sbr.rel (%p1354) target = $region88
        $region87: #{tpu_custom_call.1} parent=75 // pred_region
          %s1357 = sand.u32 %s32, 1
          %s1358 = scalar_lea.sflag [#allocation12], %s1357
          %s1359 = sand.u32 %s243, 1
          %s1360 = smul.addr %s1359, 64
          %s1361 = scalar_lea.vmem [#allocation13], %s1360
          %1362 = dma.done %s1358, 1024
        $region88: #{tpu_custom_call.1} parent=75 // pred_fallthru
          _
      $region76: #{tpu_custom_call.1} parent=5 // pred_fallthru
        _
    $region6: #{tpu_custom_call.1} parent=1 // loop_footer
      %s30 = sadd.s32 1, %s26
    $region7: #{tpu_custom_call.1} parent=1 // loop_footer_branch
      %25 = sbr.rel target = $region3
    $region8: #{tpu_custom_call.1} parent=1 // loop_exit
      _
    %1363 = vsyncpa [#allocation3], 1
    %s1364 = scalar_lea.sflag [#allocation3], 1
    %1365 = vsyncpa %s1364, 1
    %1366 = vsyncpa [#allocation6], 1
    %1367 = vsyncpa [#allocation9], 1
    %1368 = vsyncpa [#allocation4], 1
    %s1369 = scalar_lea.sflag [#allocation4], 1
    %1370 = vsyncpa %s1369, 1
    %1371 = vsyncpa [#allocation12], 1
    %s1372 = scalar_lea.sflag [#allocation12], 1
    %1373 = vsyncpa %s1372, 1

</llo_original>
